<compile_context>
chip_gen: v5e
topology: v5e:2x2
jax: 0.10.0
libtpu: 0.0.40
codegen_flags: <defaults>
</compile_context>

<pallas_src>
import numpy as np
import jax
import jax.numpy as jnp
from jax import lax
from jax.experimental import pallas as pl
from jax.experimental.pallas import tpu as pltpu

# ---- module hyper-parameters (globals referenced by the PyTorch module) ----
N_QUBITS = 4
Q_DEPTH = 6
INPUT_DIM = 512
NUM_CLASSES = 10
DIM = 2 ** N_QUBITS          # 16 statevector amplitudes
NQ_PAD = 8                   # wires padded to one full sublane group
_QUARTER_PI = np.pi / 4.0

# "A @ B^T" dimension numbers (contract lhs dim 1 with rhs dim 1), as used by flash attn.
_NT_DIMS = (((1,), (1,)), ((), ()))


# =============================== Pallas kernel ===============================
def dressed_qnet_kernel(x_ref, wpre_ref, bpre_ref, ident_ref, gsel_ref,
                        uvar_ref, wfused_t_ref, bpost_ref, o_ref):
    # --- pre_net: Linear(INPUT_DIM, N_QUBITS) on the MXU (bf16 in, f32 accumulate) ---
    pre = jnp.dot(x_ref[...], wpre_ref[...],
                  preferred_element_type=jnp.float32)                  # (TB, 8)

    # --- batch-on-lanes: (TB, 8) -> (8, TB) via an identity NT matmul ---
    pre_t = lax.dot_general(ident_ref[...], pre, _NT_DIMS,
                            preferred_element_type=jnp.float32)        # (8, TB)
    pre_t = pre_t + bpre_ref[...]                                      # (8,1) lane bcast

    # --- q_in = tanh(pre) * pi/2 ; RY(q_in) applied to |+>^n:
    #     a0 = (c - s)/sqrt(2) = cos(q_in/2 + pi/4),  a1 = (c + s)/sqrt(2) = cos(q_in/2 - pi/4)
    half = jnp.tanh(pre_t) * _QUARTER_PI                               # (8, TB)
    a0 = jnp.cos(half + _QUARTER_PI)
    a1 = jnp.cos(half - _QUARTER_PI)
    amps = jnp.concatenate([a0, a1], axis=0)                           # (16, TB) [a0; a1]

    # --- exact product state over the 16 basis states:
    #     F[16*w + idx, b] = a_{bit_w(idx)}[w, b]  (tiny gather matmul on the idle MXU)
    #     state[idx, b]    = prod_w F[16*w + idx, b]  (3 lane-dense VPU multiplies)
    f = jnp.dot(gsel_ref[...], amps, preferred_element_type=jnp.float32)   # (64, TB)
    state = f[0:16] * f[16:32] * f[32:48] * f[48:64]                        # (16, TB)

    # --- trainable variational layers folded into one 16x16 unitary ---
    psi = jnp.dot(uvar_ref[...], state, preferred_element_type=jnp.float32)  # (16, TB)
    probs = psi * psi

    # --- <Z_i> measurement and post_net folded into one (C, 16) matrix; stay lane-dense ---
    out_t = jnp.dot(wfused_t_ref[...], probs,
                    preferred_element_type=jnp.float32) + bpost_ref[...]      # (C, TB)
    o_ref[...] = out_t.astype(o_ref.dtype)


def _round_up(n, m):
    return ((n + m - 1) // m) * m


def dressed_qnet_forward(x, consts, *, batch_tile=1024, vmem_limit_bytes=None):
    """Run the dressed quantum net forward pass.

    batch_tile=1024 (bf16) keeps the double-buffered x stream at ~2 MiB: well inside the
    default scoped VMEM on v5e (16 MiB), v6e (32 MiB) and v7x (32 MiB).  The tile is a
    multiple of 128 so the (C, tile) output blocks are lane-aligned, and is shrunk so the
    grid has at least 2 steps when B allows it (keeps both v7x TensorCores busy).
    """
    B, D = x.shape
    nc = consts["wfused_t"].shape[0]
    stream_dtype = consts["wpre"].dtype
    if x.dtype != stream_dtype:
        # TODO(synk): in a real pipeline emit x in bf16 from the upstream producer so this
        #             cast fuses away instead of costing an extra HBM pass.
        x = x.astype(stream_dtype)

    tb = max(128, min(_round_up(batch_tile, 128), _round_up(pl.cdiv(B, 2), 128)))
    grid = (pl.cdiv(B, tb),)            # no jnp.pad: partial last block is masked by Pallas

    const_names = ("wpre", "bpre", "ident", "gsel", "uvar", "wfused_t", "bpost")
    const_args = [consts[k] for k in const_names]

    def _const_spec(c):                 # constants stay VMEM-resident across grid steps
        return pl.BlockSpec(c.shape, lambda i: (0, 0))

    cost = pl.CostEstimate(
        flops=2 * B * (D * NQ_PAD + NQ_PAD * NQ_PAD + 64 * DIM + DIM * DIM + DIM * nc),
        transcendentals=3 * NQ_PAD * B,
        bytes_accessed=int(x.size) * x.dtype.itemsize + B * nc * 4
                       + sum(int(c.size) * c.dtype.itemsize for c in const_args),
    )

    out_t = pl.pallas_call(
        dressed_qnet_kernel,
        out_shape=jax.ShapeDtypeStruct((nc, B), jnp.float32),
        grid_spec=pltpu.PrefetchScalarGridSpec(
            num_scalar_prefetch=0,
            grid=grid,
            in_specs=[pl.BlockSpec((tb, D), lambda i: (i, 0))]       # streamed input
                     + [_const_spec(c) for c in const_args],
            out_specs=pl.BlockSpec((nc, tb), lambda i: (0, i)),      # lane-dense stores
        ),
        compiler_params=pltpu.CompilerParams(
            dimension_semantics=("parallel",),                       # batch tiles independent
            vmem_limit_bytes=vmem_limit_bytes,
        ),
        cost_estimate=cost,
    )(x, *const_args)
    return out_t.T                      # (B, C); tiny (C*B*4 bytes) wrapper-side fix-up


# ====================== parameter folding (plain numpy / JAX glue) ======================
def _ry(theta):
    c, s = np.cos(theta / 2.0), np.sin(theta / 2.0)
    return np.array([[c, -s], [s, c]], dtype=np.float64)


def _kron_all(mats):
    out = mats[0]
    for m in mats[1:]:
        out = np.kron(out, m)
    return out


def _cnot(n, control, target):
    dim = 2 ** n
    p = np.zeros((dim, dim), dtype=np.float64)
    for i in range(dim):
        j = i ^ (1 << (n - 1 - target)) if ((i >> (n - 1 - control)) & 1) else i
        p[j, i] = 1.0
    return p


def build_variational_unitary(q_params):
    """Fold entanglers + RY(q_params) layers into a single 16x16 matrix U."""
    qw = np.asarray(q_params, dtype=np.float64).reshape(Q_DEPTH, N_QUBITS)
    ent = np.eye(DIM)
    for i in range(0, N_QUBITS - 1, 2):      # CNOT on even pairs
        ent = _cnot(N_QUBITS, i, i + 1) @ ent
    for i in range(1, N_QUBITS - 1, 2):      # CNOT on odd pairs
        ent = _cnot(N_QUBITS, i, i + 1) @ ent
    u = np.eye(DIM)
    for k in range(Q_DEPTH):
        u = ent @ u
        u = _kron_all([_ry(qw[k, w]) for w in range(N_QUBITS)]) @ u
    return u.astype(np.float32)


def build_z_signs():
    z = np.zeros((DIM, N_QUBITS), np.float32)
    for i in range(DIM):
        for w in range(N_QUBITS):
            z[i, w] = 1.0 - 2.0 * ((i >> (N_QUBITS - 1 - w)) & 1)
    return z


def build_wire_selectors():
    """(4*16, 16) one-hot rows: row 16*w + idx selects amps row w + 8*bit_w(idx) (wire 0 = MSB)."""
    g = np.zeros((N_QUBITS * DIM, 2 * NQ_PAD), np.float32)
    for w in range(N_QUBITS):
        for idx in range(DIM):
            bit = (idx >> (N_QUBITS - 1 - w)) & 1
            g[DIM * w + idx, w + NQ_PAD * bit] = 1.0
    return g


def make_dressed_qnet_constants(w_pre, b_pre, q_params, w_post, b_post,
                                stream_dtype=jnp.bfloat16):
    """Fold the module parameters into the kernel's constant operands."""
    w_pre = np.asarray(w_pre, np.float32)                 # (INPUT_DIM, n_qubits)
    b_pre = np.asarray(b_pre, np.float32).reshape(-1)     # (n_qubits,)
    w_post = np.asarray(w_post, np.float32)               # (n_qubits, num_classes)
    b_post = np.asarray(b_post, np.float32).reshape(-1)   # (num_classes,)

    d, nq = w_pre.shape
    wpre8 = np.zeros((d, NQ_PAD), np.float32)             # wires padded to a full sublane
    wpre8[:, :nq] = w_pre
    bpre8 = np.zeros((NQ_PAD, 1), np.float32)
    bpre8[:nq, 0] = b_pre

    u_var = build_variational_unitary(q_params)            # (16, 16)
    zsign = build_z_signs()                                 # (16, nq)
    wfused_t = (zsign @ w_post).T                           # (num_classes, 16)

    return dict(
        wpre=jnp.asarray(wpre8, dtype=stream_dtype),
        bpre=jnp.asarray(bpre8, jnp.float32),
        ident=jnp.eye(NQ_PAD, dtype=jnp.float32),
        gsel=jnp.asarray(build_wire_selectors()),
        uvar=jnp.asarray(u_var, jnp.float32),
        wfused_t=jnp.asarray(wfused_t, jnp.float32),
        bpost=jnp.asarray(b_post.reshape(-1, 1), jnp.float32),
    )


if __name__ == "__main__":
    B = 256                              # small demo batch; 2 grid steps at tile=128
    key = jax.random.PRNGKey(0)
    k_x, k_wpre, k_bpre, k_q, k_wpost, k_bpost = jax.random.split(key, 6)

    # deterministic synthetic parameters (shapes match nn.Linear / q_params in __init__)
    x = jax.random.normal(k_x, (B, INPUT_DIM), dtype=jnp.float32)
    w_pre = (jax.random.normal(k_wpre, (INPUT_DIM, N_QUBITS), dtype=jnp.float32)
             / np.sqrt(INPUT_DIM))
    b_pre = (jax.random.normal(k_bpre, (N_QUBITS,), dtype=jnp.float32)
             / np.sqrt(INPUT_DIM))
    q_params = 0.01 * jax.random.normal(k_q, (Q_DEPTH * N_QUBITS,), dtype=jnp.float32)
    w_post = (jax.random.normal(k_wpost, (N_QUBITS, NUM_CLASSES), dtype=jnp.float32)
              / np.sqrt(N_QUBITS))
    b_post = (jax.random.normal(k_bpost, (NUM_CLASSES,), dtype=jnp.float32)
              / np.sqrt(N_QUBITS))

    consts = make_dressed_qnet_constants(w_pre, b_pre, q_params, w_post, b_post)
    out = dressed_qnet_forward(x, consts, batch_tile=1024)
    out = jax.block_until_ready(out)

    # --- pure-JAX reference of the unfused, loop-based formulation ---
    u_var = jnp.asarray(build_variational_unitary(np.asarray(q_params)))
    zsign = jnp.asarray(build_z_signs())

    def reference(xf, wf):
        hi = lax.Precision.HIGHEST
        pre = jnp.dot(xf, wf, precision=hi) + b_pre[None, :]
        q_in = jnp.tanh(pre) * (np.pi / 2.0)
        c, s = jnp.cos(0.5 * q_in), jnp.sin(0.5 * q_in)
        a0 = (c - s) / np.sqrt(2.0)
        a1 = (c + s) / np.sqrt(2.0)
        idx = np.arange(DIM)
        state = jnp.ones((xf.shape[0], DIM), jnp.float32)
        for w in range(N_QUBITS):
            bit = (idx >> (N_QUBITS - 1 - w)) & 1
            amp = jnp.where(bit[None, :] == 0, a0[:, w:w + 1], a1[:, w:w + 1])
            state = state * amp
        psi = jnp.dot(state, u_var.T, precision=hi)
        q_out = jnp.dot(psi * psi, zsign, precision=hi)
        return jnp.dot(q_out, w_post, precision=hi) + b_post[None, :]

    # reference on the exact bf16-rounded operands the kernel streams (validates the math)
    x_r = x.astype(jnp.bfloat16).astype(jnp.float32)
    w_r = w_pre.astype(jnp.bfloat16).astype(jnp.float32)
    ref_stream = reference(x_r, w_r)
    # full-f32 module reference (loose bound on the bf16 streaming error)
    ref_f32 = reference(x, w_pre)

    assert out.shape == (B, NUM_CLASSES)
    assert bool(jnp.all(jnp.isfinite(out)))
    assert bool(jnp.allclose(out, ref_stream, rtol=2e-2, atol=2e-2))
    assert bool(jnp.allclose(out, ref_f32, rtol=1e-1, atol=1e-1))
    print("KERNEL_OK")
</pallas_src>

<mosaic_0001>
module attributes {stable_mosaic.version = 11 : i64} {
  func.func @dressed_qnet_kernel(%arg0: i32, %arg1: memref<128x512xbf16, #tpu.memory_space<vmem>>, %arg2: memref<512x8xbf16, #tpu.memory_space<vmem>>, %arg3: memref<8x1xf32, #tpu.memory_space<vmem>>, %arg4: memref<8x8xf32, #tpu.memory_space<vmem>>, %arg5: memref<64x16xf32, #tpu.memory_space<vmem>>, %arg6: memref<16x16xf32, #tpu.memory_space<vmem>>, %arg7: memref<10x16xf32, #tpu.memory_space<vmem>>, %arg8: memref<10x1xf32, #tpu.memory_space<vmem>>, %arg9: memref<10x128xf32, #tpu.memory_space<vmem>>) attributes {dimension_semantics = [#tpu.dimension_semantics<parallel>], iteration_bounds = array<i64: 2>, scalar_prefetch = 0 : i64, scratch_operands = 0 : i64, tpu.core_type = #tpu.core_type<tc>, window_params = [{transform_indices = @transform_0, window_bounds = array<i64: 128, 512>}, {pipeline_mode = #tpu.pipeline_mode<synchronous>, transform_indices = @transform_1, window_bounds = array<i64: 512, 8>}, {pipeline_mode = #tpu.pipeline_mode<synchronous>, transform_indices = @transform_2, window_bounds = array<i64: 8, 1>}, {pipeline_mode = #tpu.pipeline_mode<synchronous>, transform_indices = @transform_3, window_bounds = array<i64: 8, 8>}, {pipeline_mode = #tpu.pipeline_mode<synchronous>, transform_indices = @transform_4, window_bounds = array<i64: 64, 16>}, {pipeline_mode = #tpu.pipeline_mode<synchronous>, transform_indices = @transform_5, window_bounds = array<i64: 16, 16>}, {pipeline_mode = #tpu.pipeline_mode<synchronous>, transform_indices = @transform_6, window_bounds = array<i64: 10, 16>}, {pipeline_mode = #tpu.pipeline_mode<synchronous>, transform_indices = @transform_7, window_bounds = array<i64: 10, 1>}, {transform_indices = @transform_8, window_bounds = array<i64: 10, 128>}]} {
    %c0 = arith.constant 0 : index
    %c0_0 = arith.constant 0 : index
    %0 = vector.load %arg1[%c0, %c0_0] : memref<128x512xbf16, #tpu.memory_space<vmem>>, vector<128x512xbf16>
    %c0_1 = arith.constant 0 : index
    %c0_2 = arith.constant 0 : index
    %1 = vector.load %arg2[%c0_1, %c0_2] : memref<512x8xbf16, #tpu.memory_space<vmem>>, vector<512x8xbf16>
    %cst = arith.constant dense<0.000000e+00> : vector<128x8xf32>
    %2 = tpu.matmul %0, %1, %cst {dimension_numbers = #tpu.dot_dimension_numbers<[1], [0], [0], [1], [0, 0, 1, 1], [], []>} : vector<128x512xbf16>, vector<512x8xbf16>, vector<128x8xf32> -> vector<128x8xf32>
    %c0_3 = arith.constant 0 : index
    %c0_4 = arith.constant 0 : index
    %3 = vector.load %arg4[%c0_3, %c0_4] : memref<8x8xf32, #tpu.memory_space<vmem>>, vector<8x8xf32>
    %cst_5 = arith.constant dense<0.000000e+00> : vector<8x128xf32>
    %4 = tpu.matmul %3, %2, %cst_5 {dimension_numbers = #tpu.dot_dimension_numbers<[1], [1], [0], [0], [0, 0, 1, 0], [], []>} : vector<8x8xf32>, vector<128x8xf32>, vector<8x128xf32> -> vector<8x128xf32>
    %c0_6 = arith.constant 0 : index
    %c0_7 = arith.constant 0 : index
    %5 = vector.load %arg3[%c0_6, %c0_7] : memref<8x1xf32, #tpu.memory_space<vmem>>, vector<8x1xf32>
    %6 = vector.broadcast %5 : vector<8x1xf32> to vector<8x128xf32>
    %7 = arith.addf %4, %6 : vector<8x128xf32>
    %8 = math.tanh %7 : vector<8x128xf32>
    %cst_8 = arith.constant 0.785398185 : f32
    %9 = vector.broadcast %cst_8 : f32 to vector<8x128xf32>
    %10 = arith.mulf %8, %9 : vector<8x128xf32>
    %cst_9 = arith.constant 0.785398185 : f32
    %11 = vector.broadcast %cst_9 : f32 to vector<8x128xf32>
    %12 = arith.addf %10, %11 : vector<8x128xf32>
    %13 = math.cos %12 : vector<8x128xf32>
    %cst_10 = arith.constant 0.785398185 : f32
    %14 = vector.broadcast %cst_10 : f32 to vector<8x128xf32>
    %15 = arith.subf %10, %14 : vector<8x128xf32>
    %16 = math.cos %15 : vector<8x128xf32>
    %17 = tpu.concatenate %13, %16 in 0 : vector<8x128xf32>, vector<8x128xf32> -> vector<16x128xf32>
    %c0_11 = arith.constant 0 : index
    %c0_12 = arith.constant 0 : index
    %18 = vector.load %arg5[%c0_11, %c0_12] : memref<64x16xf32, #tpu.memory_space<vmem>>, vector<64x16xf32>
    %cst_13 = arith.constant dense<0.000000e+00> : vector<64x128xf32>
    %19 = tpu.matmul %18, %17, %cst_13 {dimension_numbers = #tpu.dot_dimension_numbers<[1], [0], [0], [1], [0, 0, 1, 1], [], []>} : vector<64x16xf32>, vector<16x128xf32>, vector<64x128xf32> -> vector<64x128xf32>
    %20 = vector.extract_strided_slice %19 {offsets = [0, 0], sizes = [16, 128], strides = [1, 1]} : vector<64x128xf32> to vector<16x128xf32>
    %21 = vector.extract_strided_slice %19 {offsets = [16, 0], sizes = [16, 128], strides = [1, 1]} : vector<64x128xf32> to vector<16x128xf32>
    %22 = arith.mulf %20, %21 : vector<16x128xf32>
    %23 = vector.extract_strided_slice %19 {offsets = [32, 0], sizes = [16, 128], strides = [1, 1]} : vector<64x128xf32> to vector<16x128xf32>
    %24 = arith.mulf %22, %23 : vector<16x128xf32>
    %25 = vector.extract_strided_slice %19 {offsets = [48, 0], sizes = [16, 128], strides = [1, 1]} : vector<64x128xf32> to vector<16x128xf32>
    %26 = arith.mulf %24, %25 : vector<16x128xf32>
    %c0_14 = arith.constant 0 : index
    %c0_15 = arith.constant 0 : index
    %27 = vector.load %arg6[%c0_14, %c0_15] : memref<16x16xf32, #tpu.memory_space<vmem>>, vector<16x16xf32>
    %cst_16 = arith.constant dense<0.000000e+00> : vector<16x128xf32>
    %28 = tpu.matmul %27, %26, %cst_16 {dimension_numbers = #tpu.dot_dimension_numbers<[1], [0], [0], [1], [0, 0, 1, 1], [], []>} : vector<16x16xf32>, vector<16x128xf32>, vector<16x128xf32> -> vector<16x128xf32>
    %29 = arith.mulf %28, %28 : vector<16x128xf32>
    %c0_17 = arith.constant 0 : index
    %c0_18 = arith.constant 0 : index
    %30 = vector.load %arg7[%c0_17, %c0_18] : memref<10x16xf32, #tpu.memory_space<vmem>>, vector<10x16xf32>
    %cst_19 = arith.constant dense<0.000000e+00> : vector<10x128xf32>
    %31 = tpu.matmul %30, %29, %cst_19 {dimension_numbers = #tpu.dot_dimension_numbers<[1], [0], [0], [1], [0, 0, 1, 1], [], []>} : vector<10x16xf32>, vector<16x128xf32>, vector<10x128xf32> -> vector<10x128xf32>
    %c0_20 = arith.constant 0 : index
    %c0_21 = arith.constant 0 : index
    %32 = vector.load %arg8[%c0_20, %c0_21] : memref<10x1xf32, #tpu.memory_space<vmem>>, vector<10x1xf32>
    %33 = vector.broadcast %32 : vector<10x1xf32> to vector<10x128xf32>
    %34 = arith.addf %31, %33 : vector<10x128xf32>
    %c0_22 = arith.constant 0 : index
    %c0_23 = arith.constant 0 : index
    %35 = vector.load %arg9[%c0_22, %c0_23] : memref<10x128xf32, #tpu.memory_space<vmem>>, vector<10x128xf32>
    tpu.vector_store %arg9[%c0_22, %c0_23], %34 {strides = array<i32>} : memref<10x128xf32, #tpu.memory_space<vmem>>, vector<10x128xf32>,
    return
  }
  func.func @transform_0(%arg0: i32) -> (i32, i32) {
    %c0_i32 = arith.constant 0 : i32
    %c0_i32_0 = arith.constant 0 : i32
    return %arg0, %c0_i32 : i32, i32
  }
  func.func @transform_1(%arg0: i32) -> (i32, i32) {
    %c0_i32 = arith.constant 0 : i32
    %c0_i32_0 = arith.constant 0 : i32
    %c0_i32_1 = arith.constant 0 : i32
    return %c0_i32, %c0_i32_0 : i32, i32
  }
  func.func @transform_2(%arg0: i32) -> (i32, i32) {
    %c0_i32 = arith.constant 0 : i32
    %c0_i32_0 = arith.constant 0 : i32
    %c0_i32_1 = arith.constant 0 : i32
    return %c0_i32, %c0_i32_0 : i32, i32
  }
  func.func @transform_3(%arg0: i32) -> (i32, i32) {
    %c0_i32 = arith.constant 0 : i32
    %c0_i32_0 = arith.constant 0 : i32
    %c0_i32_1 = arith.constant 0 : i32
    return %c0_i32, %c0_i32_0 : i32, i32
  }
  func.func @transform_4(%arg0: i32) -> (i32, i32) {
    %c0_i32 = arith.constant 0 : i32
    %c0_i32_0 = arith.constant 0 : i32
    %c0_i32_1 = arith.constant 0 : i32
    return %c0_i32, %c0_i32_0 : i32, i32
  }
  func.func @transform_5(%arg0: i32) -> (i32, i32) {
    %c0_i32 = arith.constant 0 : i32
    %c0_i32_0 = arith.constant 0 : i32
    %c0_i32_1 = arith.constant 0 : i32
    return %c0_i32, %c0_i32_0 : i32, i32
  }
  func.func @transform_6(%arg0: i32) -> (i32, i32) {
    %c0_i32 = arith.constant 0 : i32
    %c0_i32_0 = arith.constant 0 : i32
    %c0_i32_1 = arith.constant 0 : i32
    return %c0_i32, %c0_i32_0 : i32, i32
  }
  func.func @transform_7(%arg0: i32) -> (i32, i32) {
    %c0_i32 = arith.constant 0 : i32
    %c0_i32_0 = arith.constant 0 : i32
    %c0_i32_1 = arith.constant 0 : i32
    return %c0_i32, %c0_i32_0 : i32, i32
  }
  func.func @transform_8(%arg0: i32) -> (i32, i32) {
    %c0_i32 = arith.constant 0 : i32
    %c0_i32_0 = arith.constant 0 : i32
    return %c0_i32, %arg0 : i32, i32
  }
}

</mosaic_0001>

<llo_original>
// kernel: tpu_custom_call.1
$region0: #{tpu_custom_call.1}
  #allocation0 [shape = 'u32[]', space=smem, size = 0x4, offset = 0x4, fixed_abs, tag = 'smem constant byte address 0x4 - core index']
  #allocation1 [shape = 'u32[72,128]{1,0:T(1,128)}', space=vmem, size = 0x9000, scoped, tag = 'internal scratch']
  %s0 = inlined_call_operand.hbm [shape: bf16[256,512], index: 0, kind: input, shape index: {}]
  %s1 = inlined_call_operand.vmem [shape: bf16[512,8], index: 1, kind: input, shape index: {}]
  %s2 = inlined_call_operand.vmem [shape: f32[8,1], index: 2, kind: input, shape index: {}]
  %s3 = inlined_call_operand.vmem [shape: f32[8,8], index: 3, kind: input, shape index: {}]
  %s4 = inlined_call_operand.vmem [shape: f32[64,16], index: 4, kind: input, shape index: {}]
  %s5 = inlined_call_operand.vmem [shape: f32[16,16], index: 5, kind: input, shape index: {}]
  %s6 = inlined_call_operand.vmem [shape: f32[10,16], index: 6, kind: input, shape index: {}]
  %s7 = inlined_call_operand.vmem [shape: f32[10,1], index: 7, kind: input, shape index: {}]
  %s8 = inlined_call_operand.hbm [shape: f32[10,256], index: 8, kind: output, shape index: {}]
  %s9 = sld [smem:[#allocation0]]
  $region69: #{tpu_custom_call.1} parent=0
    _
  %s11 = ssub.s32 1, %s9
  %s12 = scalar_select 0, %s11, %s9
  $region1: #{tpu_custom_call.1} parent=0
    #allocation2 [shape = 'u8[262144]{0}', space=vmem, size = 0x40000, scoped, tag = 'input window, operand 0']
    #allocation3 [shape = 's32[2]{0}', space=sflag, size = 0x8, scoped, tag = 'scoped memory for tpu_custom_call.1']
    #allocation4 [shape = 's32[2]{0}', space=sflag, size = 0x8, scoped, tag = 'scoped memory for tpu_custom_call.1']
    #allocation5 [shape = 'u8[16384]{0}', space=vmem, size = 0x4000, scoped, tag = 'output window, operand 0']
    %13 = vsyncpa [#allocation3], 0
    %s14 = scalar_lea.sflag [#allocation3], 1
    %15 = vsyncpa %s14, 0
    %16 = vsyncpa [#allocation4], 0
    %s17 = scalar_lea.sflag [#allocation4], 1
    %18 = vsyncpa %s17, 0
    loop: start=0, step=1, limit=4
    $region2: #{tpu_custom_call.1} parent=1 // loop_pre_header
      _
    $region3: #{tpu_custom_call.1} parent=1 // loop_header
      %s20 = sphi 0, %s24
      %p21 = scmp.ge.s32.totalorder %s20, 4
      %s30 = sphi 0, %s32
      %s33 = sphi 0, %s30
      %s34 = sphi 0, %s33
      %s50 = sphi 0, %s34
      %s54 = sphi 0, %s54
      %s56 = sphi 0, %s54
      %s57 = sphi 0, %s56
      %s71 = sphi 0, %s57
      %s75 = sphi 0, %s75
      %s77 = sphi 0, %s75
      %s78 = sphi 0, %s77
      %s92 = sphi 0, %s78
      %s96 = sphi 0, %s96
      %s98 = sphi 0, %s96
      %s99 = sphi 0, %s98
      %s113 = sphi 0, %s99
      %s117 = sphi 0, %s117
      %s119 = sphi 0, %s117
      %s120 = sphi 0, %s119
      %s134 = sphi 0, %s120
      %s138 = sphi 0, %s138
      %s140 = sphi 0, %s138
      %s141 = sphi 0, %s140
      %s155 = sphi 0, %s141
      %s159 = sphi 0, %s159
      %s161 = sphi 0, %s159
      %s162 = sphi 0, %s161
      %s176 = sphi 0, %s162
      %s180 = sphi 0, %s180
      %s182 = sphi 0, %s180
      %s183 = sphi 0, %s182
      %s197 = sphi 0, %s183
      %s203 = sphi 0, %s205
      %s206 = sphi 0, %s203
      %s207 = sphi 0, %s206
      %s223 = sphi 0, %s207
    $region4: #{tpu_custom_call.1} parent=1 // loop_header_branch
      %23 = sbr.rel (%p21) target = $region8
    $region5: #{tpu_custom_call.1} parent=1 // loop_body
      %s25 = ssub.s32 %s20, 1
      %s26 = ssub.s32 %s20, 2
      %s27 = sadd.s32 %s20, 1
      %s28 = ssub.s32 %s20, %s27
      %p29 = scmp.eq.s32.totalorder %s28, 0
      %s31 = sadd.s32 %s30, 1
      %s32 = scalar_select %p29, %s30, %s31
      %p35 = pneg %p29
      %p36 = scmp.eq.s32.totalorder %s20, 1
      %p37 = por %p35, %p36
      %p38 = scmp.ne.s32.totalorder %s30, %s33
      %p39 = scmp.eq.s32.totalorder %s20, 0
      %p40 = por %p38, %p39
      %p41 = scmp.ne.s32.totalorder %s30, %s33
      %p42 = scmp.eq.s32.totalorder %s25, 1
      %p43 = por %p41, %p42
      %p44 = scmp.ne.s32.totalorder %s33, %s34
      %p45 = scmp.eq.s32.totalorder %s25, 0
      %p46 = por %p44, %p45
      %p47 = scmp.ne.s32.totalorder %s33, %s34
      %p48 = scmp.eq.s32.totalorder %s26, 1
      %p49 = por %p47, %p48
      %p51 = scmp.ne.s32.totalorder %s34, %s50
      %p52 = scmp.eq.s32.totalorder %s26, 0
      %p53 = por %p51, %p52
      %s55 = sadd.s32 %s54, 1
      %p58 = scmp.eq.s32.totalorder %s20, 1
      %p59 = scmp.ne.s32.totalorder %s54, %s56
      %p60 = scmp.eq.s32.totalorder %s20, 0
      %p61 = por %p59, %p60
      %p62 = scmp.ne.s32.totalorder %s54, %s56
      %p63 = scmp.eq.s32.totalorder %s25, 1
      %p64 = por %p62, %p63
      %p65 = scmp.ne.s32.totalorder %s56, %s57
      %p66 = scmp.eq.s32.totalorder %s25, 0
      %p67 = por %p65, %p66
      %p68 = scmp.ne.s32.totalorder %s56, %s57
      %p69 = scmp.eq.s32.totalorder %s26, 1
      %p70 = por %p68, %p69
      %p72 = scmp.ne.s32.totalorder %s57, %s71
      %p73 = scmp.eq.s32.totalorder %s26, 0
      %p74 = por %p72, %p73
      %s76 = sadd.s32 %s75, 1
      %p79 = scmp.eq.s32.totalorder %s20, 1
      %p80 = scmp.ne.s32.totalorder %s75, %s77
      %p81 = scmp.eq.s32.totalorder %s20, 0
      %p82 = por %p80, %p81
      %p83 = scmp.ne.s32.totalorder %s75, %s77
      %p84 = scmp.eq.s32.totalorder %s25, 1
      %p85 = por %p83, %p84
      %p86 = scmp.ne.s32.totalorder %s77, %s78
      %p87 = scmp.eq.s32.totalorder %s25, 0
      %p88 = por %p86, %p87
      %p89 = scmp.ne.s32.totalorder %s77, %s78
      %p90 = scmp.eq.s32.totalorder %s26, 1
      %p91 = por %p89, %p90
      %p93 = scmp.ne.s32.totalorder %s78, %s92
      %p94 = scmp.eq.s32.totalorder %s26, 0
      %p95 = por %p93, %p94
      %s97 = sadd.s32 %s96, 1
      %p100 = scmp.eq.s32.totalorder %s20, 1
      %p101 = scmp.ne.s32.totalorder %s96, %s98
      %p102 = scmp.eq.s32.totalorder %s20, 0
      %p103 = por %p101, %p102
      %p104 = scmp.ne.s32.totalorder %s96, %s98
      %p105 = scmp.eq.s32.totalorder %s25, 1
      %p106 = por %p104, %p105
      %p107 = scmp.ne.s32.totalorder %s98, %s99
      %p108 = scmp.eq.s32.totalorder %s25, 0
      %p109 = por %p107, %p108
      %p110 = scmp.ne.s32.totalorder %s98, %s99
      %p111 = scmp.eq.s32.totalorder %s26, 1
      %p112 = por %p110, %p111
      %p114 = scmp.ne.s32.totalorder %s99, %s113
      %p115 = scmp.eq.s32.totalorder %s26, 0
      %p116 = por %p114, %p115
      %s118 = sadd.s32 %s117, 1
      %p121 = scmp.eq.s32.totalorder %s20, 1
      %p122 = scmp.ne.s32.totalorder %s117, %s119
      %p123 = scmp.eq.s32.totalorder %s20, 0
      %p124 = por %p122, %p123
      %p125 = scmp.ne.s32.totalorder %s117, %s119
      %p126 = scmp.eq.s32.totalorder %s25, 1
      %p127 = por %p125, %p126
      %p128 = scmp.ne.s32.totalorder %s119, %s120
      %p129 = scmp.eq.s32.totalorder %s25, 0
      %p130 = por %p128, %p129
      %p131 = scmp.ne.s32.totalorder %s119, %s120
      %p132 = scmp.eq.s32.totalorder %s26, 1
      %p133 = por %p131, %p132
      %p135 = scmp.ne.s32.totalorder %s120, %s134
      %p136 = scmp.eq.s32.totalorder %s26, 0
      %p137 = por %p135, %p136
      %s139 = sadd.s32 %s138, 1
      %p142 = scmp.eq.s32.totalorder %s20, 1
      %p143 = scmp.ne.s32.totalorder %s138, %s140
      %p144 = scmp.eq.s32.totalorder %s20, 0
      %p145 = por %p143, %p144
      %p146 = scmp.ne.s32.totalorder %s138, %s140
      %p147 = scmp.eq.s32.totalorder %s25, 1
      %p148 = por %p146, %p147
      %p149 = scmp.ne.s32.totalorder %s140, %s141
      %p150 = scmp.eq.s32.totalorder %s25, 0
      %p151 = por %p149, %p150
      %p152 = scmp.ne.s32.totalorder %s140, %s141
      %p153 = scmp.eq.s32.totalorder %s26, 1
      %p154 = por %p152, %p153
      %p156 = scmp.ne.s32.totalorder %s141, %s155
      %p157 = scmp.eq.s32.totalorder %s26, 0
      %p158 = por %p156, %p157
      %s160 = sadd.s32 %s159, 1
      %p163 = scmp.eq.s32.totalorder %s20, 1
      %p164 = scmp.ne.s32.totalorder %s159, %s161
      %p165 = scmp.eq.s32.totalorder %s20, 0
      %p166 = por %p164, %p165
      %p167 = scmp.ne.s32.totalorder %s159, %s161
      %p168 = scmp.eq.s32.totalorder %s25, 1
      %p169 = por %p167, %p168
      %p170 = scmp.ne.s32.totalorder %s161, %s162
      %p171 = scmp.eq.s32.totalorder %s25, 0
      %p172 = por %p170, %p171
      %p173 = scmp.ne.s32.totalorder %s161, %s162
      %p174 = scmp.eq.s32.totalorder %s26, 1
      %p175 = por %p173, %p174
      %p177 = scmp.ne.s32.totalorder %s162, %s176
      %p178 = scmp.eq.s32.totalorder %s26, 0
      %p179 = por %p177, %p178
      %s181 = sadd.s32 %s180, 1
      %p184 = scmp.eq.s32.totalorder %s20, 1
      %p185 = scmp.ne.s32.totalorder %s180, %s182
      %p186 = scmp.eq.s32.totalorder %s20, 0
      %p187 = por %p185, %p186
      %p188 = scmp.ne.s32.totalorder %s180, %s182
      %p189 = scmp.eq.s32.totalorder %s25, 1
      %p190 = por %p188, %p189
      %p191 = scmp.ne.s32.totalorder %s182, %s183
      %p192 = scmp.eq.s32.totalorder %s25, 0
      %p193 = por %p191, %p192
      %p194 = scmp.ne.s32.totalorder %s182, %s183
      %p195 = scmp.eq.s32.totalorder %s26, 1
      %p196 = por %p194, %p195
      %p198 = scmp.ne.s32.totalorder %s183, %s197
      %p199 = scmp.eq.s32.totalorder %s26, 0
      %p200 = por %p198, %p199
      %s201 = ssub.s32 %s20, %s27
      %p202 = scmp.eq.s32.totalorder %s201, 0
      %s204 = sadd.s32 %s203, 1
      %s205 = scalar_select %p202, %s203, %s204
      %p208 = pneg %p202
      %p209 = scmp.eq.s32.totalorder %s20, 1
      %p210 = por %p208, %p209
      %p211 = scmp.ne.s32.totalorder %s203, %s206
      %p212 = scmp.eq.s32.totalorder %s20, 0
      %p213 = por %p211, %p212
      %p214 = scmp.ne.s32.totalorder %s203, %s206
      %p215 = scmp.eq.s32.totalorder %s25, 1
      %p216 = por %p214, %p215
      %p217 = scmp.ne.s32.totalorder %s206, %s207
      %p218 = scmp.eq.s32.totalorder %s25, 0
      %p219 = por %p217, %p218
      %p220 = scmp.ne.s32.totalorder %s206, %s207
      %p221 = scmp.eq.s32.totalorder %s26, 1
      %p222 = por %p220, %p221
      %p224 = scmp.ne.s32.totalorder %s207, %s223
      %p225 = scmp.eq.s32.totalorder %s26, 0
      %p226 = por %p224, %p225
      %p227 = scmp.le.s32.totalorder 1, %s20
      %p228 = scmp.lt.s32.totalorder %s20, 3
      %p229 = pnand %p227, %p228
      %p230 = pneg %p229
      // Predicated region
      $region9: #{tpu_custom_call.1} parent=5 // pred_check
        _
      $region10: #{tpu_custom_call.1} parent=5 // pred_check_branch
        %232 = sbr.rel (%p229) target = $region12
      $region11: #{tpu_custom_call.1} parent=5 // pred_region
        %s233 = ssub.s32 %s20, 1
        // Predicated region
        $region13: #{tpu_custom_call.1} parent=11 // pred_check
          %p234 = pneg %p67
        $region14: #{tpu_custom_call.1} parent=11 // pred_check_branch
          %236 = sbr.rel (%p234) target = $region16
        $region15: #{tpu_custom_call.1} parent=11 // pred_region
          _
        $region16: #{tpu_custom_call.1} parent=11 // pred_fallthru
          _
        // Predicated region
        $region17: #{tpu_custom_call.1} parent=11 // pred_check
          %p237 = pneg %p88
        $region18: #{tpu_custom_call.1} parent=11 // pred_check_branch
          %239 = sbr.rel (%p237) target = $region20
        $region19: #{tpu_custom_call.1} parent=11 // pred_region
          _
        $region20: #{tpu_custom_call.1} parent=11 // pred_fallthru
          _
        // Predicated region
        $region21: #{tpu_custom_call.1} parent=11 // pred_check
          %p240 = pneg %p109
        $region22: #{tpu_custom_call.1} parent=11 // pred_check_branch
          %242 = sbr.rel (%p240) target = $region24
        $region23: #{tpu_custom_call.1} parent=11 // pred_region
          _
        $region24: #{tpu_custom_call.1} parent=11 // pred_fallthru
          _
        // Predicated region
        $region25: #{tpu_custom_call.1} parent=11 // pred_check
          %p243 = pneg %p130
        $region26: #{tpu_custom_call.1} parent=11 // pred_check_branch
          %245 = sbr.rel (%p243) target = $region28
        $region27: #{tpu_custom_call.1} parent=11 // pred_region
          _
        $region28: #{tpu_custom_call.1} parent=11 // pred_fallthru
          _
        // Predicated region
        $region29: #{tpu_custom_call.1} parent=11 // pred_check
          %p246 = pneg %p151
        $region30: #{tpu_custom_call.1} parent=11 // pred_check_branch
          %248 = sbr.rel (%p246) target = $region32
        $region31: #{tpu_custom_call.1} parent=11 // pred_region
          _
        $region32: #{tpu_custom_call.1} parent=11 // pred_fallthru
          _
        // Predicated region
        $region33: #{tpu_custom_call.1} parent=11 // pred_check
          %p249 = pneg %p172
        $region34: #{tpu_custom_call.1} parent=11 // pred_check_branch
          %251 = sbr.rel (%p249) target = $region36
        $region35: #{tpu_custom_call.1} parent=11 // pred_region
          _
        $region36: #{tpu_custom_call.1} parent=11 // pred_fallthru
          _
        // Predicated region
        $region37: #{tpu_custom_call.1} parent=11 // pred_check
          %p252 = pneg %p193
        $region38: #{tpu_custom_call.1} parent=11 // pred_check_branch
          %254 = sbr.rel (%p252) target = $region40
        $region39: #{tpu_custom_call.1} parent=11 // pred_region
          _
        $region40: #{tpu_custom_call.1} parent=11 // pred_fallthru
          _
      $region12: #{tpu_custom_call.1} parent=5 // pred_fallthru
        _
      %p255 = scmp.lt.s32.totalorder %s20, 2
      // Predicated region
      $region41: #{tpu_custom_call.1} parent=5 // pred_check
        %p256 = pneg %p255
      $region42: #{tpu_custom_call.1} parent=5 // pred_check_branch
        %258 = sbr.rel (%p256) target = $region44
      $region43: #{tpu_custom_call.1} parent=5 // pred_region
        // Predicated region
        $region45: #{tpu_custom_call.1} parent=43 // pred_check
          %p259 = pneg %p40
        $region46: #{tpu_custom_call.1} parent=43 // pred_check_branch
          %261 = sbr.rel (%p259) target = $region48
        $region47: #{tpu_custom_call.1} parent=43 // pred_region
          %s262 = sand.u32 %s30, 1
          %s263 = scalar_lea.sflag [#allocation3], %s262
          %s264 = sand.u32 %s30, 1
          %s265 = smul.addr %s264, 256
          %s266 = scalar_lea.vmem [#allocation2], %s265
          %s267 = smul.u32 16, %s20
          %269 = vsyncadd %s263, 0
          %s270 = smul.addr %s267, 4
          %s271 = smul.addr %s270, 4
          %s272 = scalar_lea.hbm %s0, %s271
          %s273 = sshll.u32 %s272, 4
          %s274 = int_to_ptr.hbm [resolvable:$true] %s273
          %s275 = sshll.u32 %s266, 4
          %s276 = int_to_ptr.vmem [resolvable:$true] %s275
          %281 = dma.hbm_to_vmem [thread:$0]  %s274, 4096, %s276, %s263, 256, 256, 16
        $region48: #{tpu_custom_call.1} parent=43 // pred_fallthru
          _
      $region44: #{tpu_custom_call.1} parent=5 // pred_fallthru
        _
      %p282 = scmp.le.s32.totalorder 1, %s20
      %p283 = scmp.lt.s32.totalorder %s20, 3
      %p284 = pnand %p282, %p283
      %p285 = pneg %p284
      // Predicated region
      $region49: #{tpu_custom_call.1} parent=5 // pred_check
        _
      $region50: #{tpu_custom_call.1} parent=5 // pred_check_branch
        %287 = sbr.rel (%p284) target = $region52
      $region51: #{tpu_custom_call.1} parent=5 // pred_region
        %s288 = ssub.s32 %s20, 1
        %s289 = sand.u32 %s33, 1
        %s290 = scalar_lea.sflag [#allocation3], %s289
        %s291 = sand.u32 %s33, 1
        %s292 = smul.addr %s291, 256
        %s293 = scalar_lea.vmem [#allocation2], %s292
        // Predicated region
        $region53: #{tpu_custom_call.1} parent=51 // pred_check
          %p294 = pneg %p46
        $region54: #{tpu_custom_call.1} parent=51 // pred_check_branch
          %296 = sbr.rel (%p294) target = $region56
        $region55: #{tpu_custom_call.1} parent=51 // pred_region
          %298 = dma.done %s290, 4096
        $region56: #{tpu_custom_call.1} parent=51 // pred_fallthru
          _
        %s299 = sand.u32 %s33, 1
        %s300 = scalar_lea.sflag [#allocation3], %s299
        %s301 = sand.u32 %s33, 1
        %s302 = smul.addr %s301, 256
        %s303 = scalar_lea.vmem [#allocation2], %s302
        %p304 = pneg %p46
        %p305 = pneg %p43
        %p306 = pneg %p67
        %p307 = pneg %p64
        %p308 = pneg %p88
        %p309 = pneg %p85
        %p310 = pneg %p109
        %p311 = pneg %p106
        %p312 = pneg %p130
        %p313 = pneg %p127
        %p314 = pneg %p151
        %p315 = pneg %p148
        %p316 = pneg %p172
        %p317 = pneg %p169
        %p318 = pneg %p193
        %p319 = pneg %p190
        %p320 = pneg %p219
        %p321 = pneg %p216
        %s322 = sand.u32 %s206, 1
        %s323 = scalar_lea.sflag [#allocation4], %s322
        %s324 = sand.u32 %s206, 1
        %s325 = smul.addr %s324, 16
        %s326 = scalar_lea.vmem [#allocation5], %s325
        %s327 = smul.u32 16, %s25
        %v328 = vld [vmem:[%s293] sm:$0xff]
        %v329 = vld [vmem:[%s293 + $0x8] sm:$0xff]
        %v330 = vld [vmem:[%s293 + $0x10] sm:$0xff]
        %v331 = vld [vmem:[%s293 + $0x18] sm:$0xff]
        %v332 = vld [vmem:[%s293 + $0x20] sm:$0xff]
        %v333 = vld [vmem:[%s293 + $0x28] sm:$0xff]
        %v334 = vld [vmem:[%s293 + $0x30] sm:$0xff]
        %v335 = vld [vmem:[%s293 + $0x38] sm:$0xff]
        %v336 = vld [vmem:[%s293 + $0x40] sm:$0xff]
        %v337 = vld [vmem:[%s293 + $0x48] sm:$0xff]
        %v338 = vld [vmem:[%s293 + $0x50] sm:$0xff]
        %v339 = vld [vmem:[%s293 + $0x58] sm:$0xff]
        %v340 = vld [vmem:[%s293 + $0x60] sm:$0xff]
        %v341 = vld [vmem:[%s293 + $0x68] sm:$0xff]
        %v342 = vld [vmem:[%s293 + $0x70] sm:$0xff]
        %v343 = vld [vmem:[%s293 + $0x78] sm:$0xff]
        %v344 = vld [vmem:[%s293 + $0x80] sm:$0xff]
        %v345 = vld [vmem:[%s293 + $0x88] sm:$0xff]
        %v346 = vld [vmem:[%s293 + $0x90] sm:$0xff]
        %v347 = vld [vmem:[%s293 + $0x98] sm:$0xff]
        %v348 = vld [vmem:[%s293 + $0xa0] sm:$0xff]
        %v349 = vld [vmem:[%s293 + $0xa8] sm:$0xff]
        %v350 = vld [vmem:[%s293 + $0xb0] sm:$0xff]
        %v351 = vld [vmem:[%s293 + $0xb8] sm:$0xff]
        %v352 = vld [vmem:[%s293 + $0xc0] sm:$0xff]
        %v353 = vld [vmem:[%s293 + $0xc8] sm:$0xff]
        %v354 = vld [vmem:[%s293 + $0xd0] sm:$0xff]
        %v355 = vld [vmem:[%s293 + $0xd8] sm:$0xff]
        %v356 = vld [vmem:[%s293 + $0xe0] sm:$0xff]
        %v357 = vld [vmem:[%s293 + $0xe8] sm:$0xff]
        %v358 = vld [vmem:[%s293 + $0xf0] sm:$0xff]
        %v359 = vld [vmem:[%s293 + $0xf8] sm:$0xff]
        %v360 = vld [vmem:[%s1] sm:$0xf]
        %v361 = vld [vmem:[%s1 + $0x4] sm:$0xf]
        %v362 = vld [vmem:[%s1 + $0x8] sm:$0xf]
        %v363 = vld [vmem:[%s1 + $0xc] sm:$0xf]
        %v364 = vld [vmem:[%s1 + $0x10] sm:$0xf]
        %v365 = vld [vmem:[%s1 + $0x14] sm:$0xf]
        %v366 = vld [vmem:[%s1 + $0x18] sm:$0xf]
        %v367 = vld [vmem:[%s1 + $0x1c] sm:$0xf]
        %v368 = vld [vmem:[%s1 + $0x20] sm:$0xf]
        %v369 = vld [vmem:[%s1 + $0x24] sm:$0xf]
        %v370 = vld [vmem:[%s1 + $0x28] sm:$0xf]
        %v371 = vld [vmem:[%s1 + $0x2c] sm:$0xf]
        %v372 = vld [vmem:[%s1 + $0x30] sm:$0xf]
        %v373 = vld [vmem:[%s1 + $0x34] sm:$0xf]
        %v374 = vld [vmem:[%s1 + $0x38] sm:$0xf]
        %v375 = vld [vmem:[%s1 + $0x3c] sm:$0xf]
        %v376 = vld [vmem:[%s1 + $0x40] sm:$0xf]
        %v377 = vld [vmem:[%s1 + $0x44] sm:$0xf]
        %v378 = vld [vmem:[%s1 + $0x48] sm:$0xf]
        %v379 = vld [vmem:[%s1 + $0x4c] sm:$0xf]
        %v380 = vld [vmem:[%s1 + $0x50] sm:$0xf]
        %v381 = vld [vmem:[%s1 + $0x54] sm:$0xf]
        %v382 = vld [vmem:[%s1 + $0x58] sm:$0xf]
        %v383 = vld [vmem:[%s1 + $0x5c] sm:$0xf]
        %v384 = vld [vmem:[%s1 + $0x60] sm:$0xf]
        %v385 = vld [vmem:[%s1 + $0x64] sm:$0xf]
        %v386 = vld [vmem:[%s1 + $0x68] sm:$0xf]
        %v387 = vld [vmem:[%s1 + $0x6c] sm:$0xf]
        %v388 = vld [vmem:[%s1 + $0x70] sm:$0xf]
        %v389 = vld [vmem:[%s1 + $0x74] sm:$0xf]
        %v390 = vld [vmem:[%s1 + $0x78] sm:$0xf]
        %v391 = vld [vmem:[%s1 + $0x7c] sm:$0xf]
        %v392 = vld [vmem:[%s1 + $0x80] sm:$0xf]
        %v393 = vld [vmem:[%s1 + $0x84] sm:$0xf]
        %v394 = vld [vmem:[%s1 + $0x88] sm:$0xf]
        %v395 = vld [vmem:[%s1 + $0x8c] sm:$0xf]
        %v396 = vld [vmem:[%s1 + $0x90] sm:$0xf]
        %v397 = vld [vmem:[%s1 + $0x94] sm:$0xf]
        %v398 = vld [vmem:[%s1 + $0x98] sm:$0xf]
        %v399 = vld [vmem:[%s1 + $0x9c] sm:$0xf]
        %v400 = vld [vmem:[%s1 + $0xa0] sm:$0xf]
        %v401 = vld [vmem:[%s1 + $0xa4] sm:$0xf]
        %v402 = vld [vmem:[%s1 + $0xa8] sm:$0xf]
        %v403 = vld [vmem:[%s1 + $0xac] sm:$0xf]
        %v404 = vld [vmem:[%s1 + $0xb0] sm:$0xf]
        %v405 = vld [vmem:[%s1 + $0xb4] sm:$0xf]
        %v406 = vld [vmem:[%s1 + $0xb8] sm:$0xf]
        %v407 = vld [vmem:[%s1 + $0xbc] sm:$0xf]
        %v408 = vld [vmem:[%s1 + $0xc0] sm:$0xf]
        %v409 = vld [vmem:[%s1 + $0xc4] sm:$0xf]
        %v410 = vld [vmem:[%s1 + $0xc8] sm:$0xf]
        %v411 = vld [vmem:[%s1 + $0xcc] sm:$0xf]
        %v412 = vld [vmem:[%s1 + $0xd0] sm:$0xf]
        %v413 = vld [vmem:[%s1 + $0xd4] sm:$0xf]
        %v414 = vld [vmem:[%s1 + $0xd8] sm:$0xf]
        %v415 = vld [vmem:[%s1 + $0xdc] sm:$0xf]
        %v416 = vld [vmem:[%s1 + $0xe0] sm:$0xf]
        %v417 = vld [vmem:[%s1 + $0xe4] sm:$0xf]
        %v418 = vld [vmem:[%s1 + $0xe8] sm:$0xf]
        %v419 = vld [vmem:[%s1 + $0xec] sm:$0xf]
        %v420 = vld [vmem:[%s1 + $0xf0] sm:$0xf]
        %v421 = vld [vmem:[%s1 + $0xf4] sm:$0xf]
        %v422 = vld [vmem:[%s1 + $0xf8] sm:$0xf]
        %v423 = vld [vmem:[%s1 + $0xfc] sm:$0xf]
        %v456 = vunpack.c.l.b16 %v328
        %v457 = vunpack.c.h.b16 %v328
        %v458 = vunpack.c.l.b16 %v329
        %v459 = vunpack.c.h.b16 %v329
        %v460 = vunpack.c.l.b16 %v330
        %v461 = vunpack.c.h.b16 %v330
        %v462 = vunpack.c.l.b16 %v331
        %v463 = vunpack.c.h.b16 %v331
        %v464 = vunpack.c.l.b16 %v332
        %v465 = vunpack.c.h.b16 %v332
        %v466 = vunpack.c.l.b16 %v333
        %v467 = vunpack.c.h.b16 %v333
        %v468 = vunpack.c.l.b16 %v334
        %v469 = vunpack.c.h.b16 %v334
        %v470 = vunpack.c.l.b16 %v335
        %v471 = vunpack.c.h.b16 %v335
        %v472 = vunpack.c.l.b16 %v336
        %v473 = vunpack.c.h.b16 %v336
        %v474 = vunpack.c.l.b16 %v337
        %v475 = vunpack.c.h.b16 %v337
        %v476 = vunpack.c.l.b16 %v338
        %v477 = vunpack.c.h.b16 %v338
        %v478 = vunpack.c.l.b16 %v339
        %v479 = vunpack.c.h.b16 %v339
        %v480 = vunpack.c.l.b16 %v340
        %v481 = vunpack.c.h.b16 %v340
        %v482 = vunpack.c.l.b16 %v341
        %v483 = vunpack.c.h.b16 %v341
        %v484 = vunpack.c.l.b16 %v342
        %v485 = vunpack.c.h.b16 %v342
        %v486 = vunpack.c.l.b16 %v343
        %v487 = vunpack.c.h.b16 %v343
        %v488 = vunpack.c.l.b16 %v344
        %v489 = vunpack.c.h.b16 %v344
        %v490 = vunpack.c.l.b16 %v345
        %v491 = vunpack.c.h.b16 %v345
        %v492 = vunpack.c.l.b16 %v346
        %v493 = vunpack.c.h.b16 %v346
        %v494 = vunpack.c.l.b16 %v347
        %v495 = vunpack.c.h.b16 %v347
        %v496 = vunpack.c.l.b16 %v348
        %v497 = vunpack.c.h.b16 %v348
        %v498 = vunpack.c.l.b16 %v349
        %v499 = vunpack.c.h.b16 %v349
        %v500 = vunpack.c.l.b16 %v350
        %v501 = vunpack.c.h.b16 %v350
        %v502 = vunpack.c.l.b16 %v351
        %v503 = vunpack.c.h.b16 %v351
        %v504 = vunpack.c.l.b16 %v352
        %v505 = vunpack.c.h.b16 %v352
        %v506 = vunpack.c.l.b16 %v353
        %v507 = vunpack.c.h.b16 %v353
        %v508 = vunpack.c.l.b16 %v354
        %v509 = vunpack.c.h.b16 %v354
        %v510 = vunpack.c.l.b16 %v355
        %v511 = vunpack.c.h.b16 %v355
        %v512 = vunpack.c.l.b16 %v356
        %v513 = vunpack.c.h.b16 %v356
        %v514 = vunpack.c.l.b16 %v357
        %v515 = vunpack.c.h.b16 %v357
        %v516 = vunpack.c.l.b16 %v358
        %v517 = vunpack.c.h.b16 %v358
        %v518 = vunpack.c.l.b16 %v359
        %v519 = vunpack.c.h.b16 %v359
        %v520 = vpack.c.b16 %v460, %v456
        %v521 = vpack.c.b16 %v461, %v457
        %v522 = vpack.c.b16 %v462, %v458
        %v523 = vpack.c.b16 %v463, %v459
        %v524 = vpack.c.b16 %v468, %v464
        %v525 = vpack.c.b16 %v469, %v465
        %v526 = vpack.c.b16 %v470, %v466
        %v527 = vpack.c.b16 %v471, %v467
        %v528 = vpack.c.b16 %v476, %v472
        %v529 = vpack.c.b16 %v477, %v473
        %v530 = vpack.c.b16 %v478, %v474
        %v531 = vpack.c.b16 %v479, %v475
        %v532 = vpack.c.b16 %v484, %v480
        %v533 = vpack.c.b16 %v485, %v481
        %v534 = vpack.c.b16 %v486, %v482
        %v535 = vpack.c.b16 %v487, %v483
        %v536 = vpack.c.b16 %v492, %v488
        %v537 = vpack.c.b16 %v493, %v489
        %v538 = vpack.c.b16 %v494, %v490
        %v539 = vpack.c.b16 %v495, %v491
        %v540 = vpack.c.b16 %v500, %v496
        %v541 = vpack.c.b16 %v501, %v497
        %v542 = vpack.c.b16 %v502, %v498
        %v543 = vpack.c.b16 %v503, %v499
        %v544 = vpack.c.b16 %v508, %v504
        %v545 = vpack.c.b16 %v509, %v505
        %v546 = vpack.c.b16 %v510, %v506
        %v547 = vpack.c.b16 %v511, %v507
        %v548 = vpack.c.b16 %v516, %v512
        %v549 = vpack.c.b16 %v517, %v513
        %v550 = vpack.c.b16 %v518, %v514
        %v551 = vpack.c.b16 %v519, %v515
        %v648 = vunpack.c.l.b16 %v360
        %v649 = vunpack.c.l.b16 %v361
        %v650 = vunpack.c.l.b16 %v362
        %v651 = vunpack.c.l.b16 %v363
        %v652 = vunpack.c.l.b16 %v364
        %v653 = vunpack.c.l.b16 %v365
        %v654 = vunpack.c.l.b16 %v366
        %v655 = vunpack.c.l.b16 %v367
        %v656 = vunpack.c.l.b16 %v368
        %v657 = vunpack.c.l.b16 %v369
        %v658 = vunpack.c.l.b16 %v370
        %v659 = vunpack.c.l.b16 %v371
        %v660 = vunpack.c.l.b16 %v372
        %v661 = vunpack.c.l.b16 %v373
        %v662 = vunpack.c.l.b16 %v374
        %v663 = vunpack.c.l.b16 %v375
        %v664 = vunpack.c.l.b16 %v376
        %v665 = vunpack.c.l.b16 %v377
        %v666 = vunpack.c.l.b16 %v378
        %v667 = vunpack.c.l.b16 %v379
        %v668 = vunpack.c.l.b16 %v380
        %v669 = vunpack.c.l.b16 %v381
        %v670 = vunpack.c.l.b16 %v382
        %v671 = vunpack.c.l.b16 %v383
        %v672 = vunpack.c.l.b16 %v384
        %v673 = vunpack.c.l.b16 %v385
        %v674 = vunpack.c.l.b16 %v386
        %v675 = vunpack.c.l.b16 %v387
        %v676 = vunpack.c.l.b16 %v388
        %v677 = vunpack.c.l.b16 %v389
        %v678 = vunpack.c.l.b16 %v390
        %v679 = vunpack.c.l.b16 %v391
        %v680 = vunpack.c.l.b16 %v392
        %v681 = vunpack.c.l.b16 %v393
        %v682 = vunpack.c.l.b16 %v394
        %v683 = vunpack.c.l.b16 %v395
        %v684 = vunpack.c.l.b16 %v396
        %v685 = vunpack.c.l.b16 %v397
        %v686 = vunpack.c.l.b16 %v398
        %v687 = vunpack.c.l.b16 %v399
        %v688 = vunpack.c.l.b16 %v400
        %v689 = vunpack.c.l.b16 %v401
        %v690 = vunpack.c.l.b16 %v402
        %v691 = vunpack.c.l.b16 %v403
        %v692 = vunpack.c.l.b16 %v404
        %v693 = vunpack.c.l.b16 %v405
        %v694 = vunpack.c.l.b16 %v406
        %v695 = vunpack.c.l.b16 %v407
        %v696 = vunpack.c.l.b16 %v408
        %v697 = vunpack.c.l.b16 %v409
        %v698 = vunpack.c.l.b16 %v410
        %v699 = vunpack.c.l.b16 %v411
        %v700 = vunpack.c.l.b16 %v412
        %v701 = vunpack.c.l.b16 %v413
        %v702 = vunpack.c.l.b16 %v414
        %v703 = vunpack.c.l.b16 %v415
        %v704 = vunpack.c.l.b16 %v416
        %v705 = vunpack.c.l.b16 %v417
        %v706 = vunpack.c.l.b16 %v418
        %v707 = vunpack.c.l.b16 %v419
        %v708 = vunpack.c.l.b16 %v420
        %v709 = vunpack.c.l.b16 %v421
        %v710 = vunpack.c.l.b16 %v422
        %v711 = vunpack.c.l.b16 %v423
        %v712 = vpack.c.b16 %v649, %v648
        %v713 = vpack.c.b16 %v651, %v650
        %v714 = vpack.c.b16 %v653, %v652
        %v715 = vpack.c.b16 %v655, %v654
        %v716 = vpack.c.b16 %v657, %v656
        %v717 = vpack.c.b16 %v659, %v658
        %v718 = vpack.c.b16 %v661, %v660
        %v719 = vpack.c.b16 %v663, %v662
        %v720 = vpack.c.b16 %v665, %v664
        %v721 = vpack.c.b16 %v667, %v666
        %v722 = vpack.c.b16 %v669, %v668
        %v723 = vpack.c.b16 %v671, %v670
        %v724 = vpack.c.b16 %v673, %v672
        %v725 = vpack.c.b16 %v675, %v674
        %v726 = vpack.c.b16 %v677, %v676
        %v727 = vpack.c.b16 %v679, %v678
        %v728 = vpack.c.b16 %v681, %v680
        %v729 = vpack.c.b16 %v683, %v682
        %v730 = vpack.c.b16 %v685, %v684
        %v731 = vpack.c.b16 %v687, %v686
        %v732 = vpack.c.b16 %v689, %v688
        %v733 = vpack.c.b16 %v691, %v690
        %v734 = vpack.c.b16 %v693, %v692
        %v735 = vpack.c.b16 %v695, %v694
        %v736 = vpack.c.b16 %v697, %v696
        %v737 = vpack.c.b16 %v699, %v698
        %v738 = vpack.c.b16 %v701, %v700
        %v739 = vpack.c.b16 %v703, %v702
        %v740 = vpack.c.b16 %v705, %v704
        %v741 = vpack.c.b16 %v707, %v706
        %v742 = vpack.c.b16 %v709, %v708
        %v743 = vpack.c.b16 %v711, %v710
        %776 = vmatpush.bf16.msra.mxu0 %v719
        %777 = vmatpush.bf16.msra.mxu0 %v718
        %778 = vmatpush.bf16.msra.mxu0 %v717
        %779 = vmatpush.bf16.msra.mxu0 %v716
        %780 = vmatpush.bf16.msra.mxu0 %v715
        %781 = vmatpush.bf16.msra.mxu0 %v714
        %782 = vmatpush.bf16.msra.mxu0 %v713
        %783 = vmatpush.bf16.msra.mxu0 %v712
        %784 = vmatmul.bf16.gmra.mxu0 %v520
        %v785 = vpop.f32.mrf.mxu0
        %v786 = vadd.f32 0.0, %v785
        %v787 = vpop.f32.mrf.mxu0
        %v788 = vadd.f32 0.0, %v787
        %789 = vmatmul.bf16.gmra.mxu0 %v524
        %v790 = vpop.f32.mrf.mxu0
        %v791 = vadd.f32 0.0, %v790
        %v792 = vpop.f32.mrf.mxu0
        %v793 = vadd.f32 0.0, %v792
        %794 = vmatmul.bf16.gmra.mxu0 %v528
        %v795 = vpop.f32.mrf.mxu0
        %v796 = vadd.f32 0.0, %v795
        %v797 = vpop.f32.mrf.mxu0
        %v798 = vadd.f32 0.0, %v797
        %799 = vmatmul.bf16.gmra.mxu0 %v532
        %v800 = vpop.f32.mrf.mxu0
        %v801 = vadd.f32 0.0, %v800
        %v802 = vpop.f32.mrf.mxu0
        %v803 = vadd.f32 0.0, %v802
        %804 = vmatmul.bf16.gmra.mxu0 %v536
        %v805 = vpop.f32.mrf.mxu0
        %v806 = vadd.f32 0.0, %v805
        %v807 = vpop.f32.mrf.mxu0
        %v808 = vadd.f32 0.0, %v807
        %809 = vmatmul.bf16.gmra.mxu0 %v540
        %v810 = vpop.f32.mrf.mxu0
        %v811 = vadd.f32 0.0, %v810
        %v812 = vpop.f32.mrf.mxu0
        %v813 = vadd.f32 0.0, %v812
        %814 = vmatmul.bf16.gmra.mxu0 %v544
        %v815 = vpop.f32.mrf.mxu0
        %v816 = vadd.f32 0.0, %v815
        %v817 = vpop.f32.mrf.mxu0
        %v818 = vadd.f32 0.0, %v817
        %819 = vmatmul.bf16.gmra.mxu0 %v548
        %v820 = vpop.f32.mrf.mxu0
        %v821 = vadd.f32 0.0, %v820
        %v822 = vpop.f32.mrf.mxu0
        %v823 = vadd.f32 0.0, %v822
        %824 = vdwg.mxu0
        %825 = vmatpush.bf16.msra.mxu0 %v727
        %826 = vmatpush.bf16.msra.mxu0 %v726
        %827 = vmatpush.bf16.msra.mxu0 %v725
        %828 = vmatpush.bf16.msra.mxu0 %v724
        %829 = vmatpush.bf16.msra.mxu0 %v723
        %830 = vmatpush.bf16.msra.mxu0 %v722
        %831 = vmatpush.bf16.msra.mxu0 %v721
        %832 = vmatpush.bf16.msra.mxu0 %v720
        %833 = vmatmul.bf16.gmra.mxu0 %v521
        %v834 = vpop.f32.mrf.mxu0
        %v835 = vadd.f32 %v786, %v834
        %v836 = vpop.f32.mrf.mxu0
        %v837 = vadd.f32 %v788, %v836
        %838 = vmatmul.bf16.gmra.mxu0 %v525
        %v839 = vpop.f32.mrf.mxu0
        %v840 = vadd.f32 %v791, %v839
        %v841 = vpop.f32.mrf.mxu0
        %v842 = vadd.f32 %v793, %v841
        %843 = vmatmul.bf16.gmra.mxu0 %v529
        %v844 = vpop.f32.mrf.mxu0
        %v845 = vadd.f32 %v796, %v844
        %v846 = vpop.f32.mrf.mxu0
        %v847 = vadd.f32 %v798, %v846
        %848 = vmatmul.bf16.gmra.mxu0 %v533
        %v849 = vpop.f32.mrf.mxu0
        %v850 = vadd.f32 %v801, %v849
        %v851 = vpop.f32.mrf.mxu0
        %v852 = vadd.f32 %v803, %v851
        %853 = vmatmul.bf16.gmra.mxu0 %v537
        %v854 = vpop.f32.mrf.mxu0
        %v855 = vadd.f32 %v806, %v854
        %v856 = vpop.f32.mrf.mxu0
        %v857 = vadd.f32 %v808, %v856
        %858 = vmatmul.bf16.gmra.mxu0 %v541
        %v859 = vpop.f32.mrf.mxu0
        %v860 = vadd.f32 %v811, %v859
        %v861 = vpop.f32.mrf.mxu0
        %v862 = vadd.f32 %v813, %v861
        %863 = vmatmul.bf16.gmra.mxu0 %v545
        %v864 = vpop.f32.mrf.mxu0
        %v865 = vadd.f32 %v816, %v864
        %v866 = vpop.f32.mrf.mxu0
        %v867 = vadd.f32 %v818, %v866
        %868 = vmatmul.bf16.gmra.mxu0 %v549
        %v869 = vpop.f32.mrf.mxu0
        %v870 = vadd.f32 %v821, %v869
        %v871 = vpop.f32.mrf.mxu0
        %v872 = vadd.f32 %v823, %v871
        %873 = vdwg.mxu0
        %874 = vmatpush.bf16.msra.mxu0 %v735
        %875 = vmatpush.bf16.msra.mxu0 %v734
        %876 = vmatpush.bf16.msra.mxu0 %v733
        %877 = vmatpush.bf16.msra.mxu0 %v732
        %878 = vmatpush.bf16.msra.mxu0 %v731
        %879 = vmatpush.bf16.msra.mxu0 %v730
        %880 = vmatpush.bf16.msra.mxu0 %v729
        %881 = vmatpush.bf16.msra.mxu0 %v728
        %882 = vmatmul.bf16.gmra.mxu0 %v522
        %v883 = vpop.f32.mrf.mxu0
        %v884 = vadd.f32 %v835, %v883
        %v885 = vpop.f32.mrf.mxu0
        %v886 = vadd.f32 %v837, %v885
        %887 = vmatmul.bf16.gmra.mxu0 %v526
        %v888 = vpop.f32.mrf.mxu0
        %v889 = vadd.f32 %v840, %v888
        %v890 = vpop.f32.mrf.mxu0
        %v891 = vadd.f32 %v842, %v890
        %892 = vmatmul.bf16.gmra.mxu0 %v530
        %v893 = vpop.f32.mrf.mxu0
        %v894 = vadd.f32 %v845, %v893
        %v895 = vpop.f32.mrf.mxu0
        %v896 = vadd.f32 %v847, %v895
        %897 = vmatmul.bf16.gmra.mxu0 %v534
        %v898 = vpop.f32.mrf.mxu0
        %v899 = vadd.f32 %v850, %v898
        %v900 = vpop.f32.mrf.mxu0
        %v901 = vadd.f32 %v852, %v900
        %902 = vmatmul.bf16.gmra.mxu0 %v538
        %v903 = vpop.f32.mrf.mxu0
        %v904 = vadd.f32 %v855, %v903
        %v905 = vpop.f32.mrf.mxu0
        %v906 = vadd.f32 %v857, %v905
        %907 = vmatmul.bf16.gmra.mxu0 %v542
        %v908 = vpop.f32.mrf.mxu0
        %v909 = vadd.f32 %v860, %v908
        %v910 = vpop.f32.mrf.mxu0
        %v911 = vadd.f32 %v862, %v910
        %912 = vmatmul.bf16.gmra.mxu0 %v546
        %v913 = vpop.f32.mrf.mxu0
        %v914 = vadd.f32 %v865, %v913
        %v915 = vpop.f32.mrf.mxu0
        %v916 = vadd.f32 %v867, %v915
        %917 = vmatmul.bf16.gmra.mxu0 %v550
        %v918 = vpop.f32.mrf.mxu0
        %v919 = vadd.f32 %v870, %v918
        %v920 = vpop.f32.mrf.mxu0
        %v921 = vadd.f32 %v872, %v920
        %922 = vdwg.mxu0
        %923 = vmatpush.bf16.msra.mxu0 %v743
        %924 = vmatpush.bf16.msra.mxu0 %v742
        %925 = vmatpush.bf16.msra.mxu0 %v741
        %926 = vmatpush.bf16.msra.mxu0 %v740
        %927 = vmatpush.bf16.msra.mxu0 %v739
        %928 = vmatpush.bf16.msra.mxu0 %v738
        %929 = vmatpush.bf16.msra.mxu0 %v737
        %930 = vmatpush.bf16.msra.mxu0 %v736
        %931 = vmatmul.bf16.gmra.mxu0 %v523
        %v932 = vpop.f32.mrf.mxu0
        %v933 = vadd.f32 %v884, %v932
        %v934 = vpop.f32.mrf.mxu0
        %v935 = vadd.f32 %v886, %v934
        %936 = vmatmul.bf16.gmra.mxu0 %v527
        %v937 = vpop.f32.mrf.mxu0
        %v938 = vadd.f32 %v889, %v937
        %v939 = vpop.f32.mrf.mxu0
        %v940 = vadd.f32 %v891, %v939
        %941 = vmatmul.bf16.gmra.mxu0 %v531
        %v942 = vpop.f32.mrf.mxu0
        %v943 = vadd.f32 %v894, %v942
        %v944 = vpop.f32.mrf.mxu0
        %v945 = vadd.f32 %v896, %v944
        %946 = vmatmul.bf16.gmra.mxu0 %v535
        %v947 = vpop.f32.mrf.mxu0
        %v948 = vadd.f32 %v899, %v947
        %v949 = vpop.f32.mrf.mxu0
        %v950 = vadd.f32 %v901, %v949
        %951 = vmatmul.bf16.gmra.mxu0 %v539
        %v952 = vpop.f32.mrf.mxu0
        %v953 = vadd.f32 %v904, %v952
        %v954 = vpop.f32.mrf.mxu0
        %v955 = vadd.f32 %v906, %v954
        %956 = vmatmul.bf16.gmra.mxu0 %v543
        %v957 = vpop.f32.mrf.mxu0
        %v958 = vadd.f32 %v909, %v957
        %v959 = vpop.f32.mrf.mxu0
        %v960 = vadd.f32 %v911, %v959
        %961 = vmatmul.bf16.gmra.mxu0 %v547
        %v962 = vpop.f32.mrf.mxu0
        %v963 = vadd.f32 %v914, %v962
        %v964 = vpop.f32.mrf.mxu0
        %v965 = vadd.f32 %v916, %v964
        %966 = vmatmul.bf16.gmra.mxu0 %v551
        %v967 = vpop.f32.mrf.mxu0
        %v968 = vadd.f32 %v919, %v967
        %v969 = vpop.f32.mrf.mxu0
        %v970 = vadd.f32 %v921, %v969
        %971 = vdwg.mxu0
        %v972 = vld [vmem:[%s3] sm:$0xff]
        %v973 = vld [vmem:[%s2] sm:$0xff]
        %975 = vset.pattern.permute.xlu0 0
        %976 = vperm.xlu0 %975, %v973
        %v977 = vpop.permute.xlu0 %976
        %vm979 = vcmask 64512
        %v981 = vsel %vm979, %v972, 0
        %v984 = vsel %vm979, %v933, 0
        %v987 = vsel %vm979, %v935, 0
        %v990 = vsel %vm979, %v938, 0
        %v993 = vsel %vm979, %v940, 0
        %v996 = vsel %vm979, %v943, 0
        %v999 = vsel %vm979, %v945, 0
        %v1002 = vsel %vm979, %v948, 0
        %v1005 = vsel %vm979, %v950, 0
        %v1008 = vsel %vm979, %v953, 0
        %v1011 = vsel %vm979, %v955, 0
        %v1014 = vsel %vm979, %v958, 0
        %v1017 = vsel %vm979, %v960, 0
        %v1020 = vsel %vm979, %v963, 0
        %v1023 = vsel %vm979, %v965, 0
        %v1026 = vsel %vm979, %v968, 0
        %v1029 = vsel %vm979, %v970, 0
        %1031 = vmatpush.xpose.msra.mxu0 %v1029
        %1032 = vmatpush.xpose.msra.mxu0 %v1026
        %1033 = vmatpush.xpose.msra.mxu0 %v1023
        %1034 = vmatpush.xpose.msra.mxu0 %v1020
        %1035 = vmatpush.xpose.msra.mxu0 %v1017
        %1036 = vmatpush.xpose.msra.mxu0 %v1014
        %1037 = vmatpush.xpose.msra.mxu0 %v1011
        %1038 = vmatpush.xpose.msra.mxu0 %v1008
        %1039 = vmatpush.xpose.msra.mxu0 %v1005
        %1040 = vmatpush.xpose.msra.mxu0 %v1002
        %1041 = vmatpush.xpose.msra.mxu0 %v999
        %1042 = vmatpush.xpose.msra.mxu0 %v996
        %1043 = vmatpush.xpose.msra.mxu0 %v993
        %1044 = vmatpush.xpose.msra.mxu0 %v990
        %1045 = vmatpush.xpose.msra.mxu0 %v987
        %1046 = vmatpush.xpose.msra.mxu0 %v984
        %1047 = vmatmul.f32.gmra.mxu0 %v981
        %v1048 = vpop.f32.mrf.mxu0
        %v1049 = vadd.f32 %v977, %v1048
        %1050 = vdwg.mxu0
        %v1051 = vtanh.pop %v1049
        %v1052 = vmul.f32 %v1051, 0.7853982
        %v1053 = vadd.f32 %v1052, 0.7853982
        %v1054 = vand.u32 2147483647, %v1053
        %vm1055 = vcmp.le.f32.partialorder %v1054, 0.7853982
        %vm1056 = vcmp.lt.s32.totalorder %v1053, 0
        %v1057 = vand.u32 %v1053, 2139095040
        %v1058 = vshrl.u32 %v1057, 23
        %v1059 = vsub.s32 %v1058, 127
        %v1060 = vand.u32 2147483647, %v1053
        %v1061 = vand.u32 %v1060, 8388607
        %v1062 = vor.u32 %v1061, 8388608
        %v1063 = vsub.s32 0, %v1062
        %v1064 = vadd.s32 %v1059, 1
        %vm1065 = vcmp.gt.s32.totalorder %v1064, 0
        %v1066 = vsel %vm1065, %v1064, 0
        %v1067 = vshrl.u32 %v1066, 5
        %v1068 = vand.u32 %v1066, 31
        %v1069 = vsub.s32 32, %v1068
        %v1070 = vshrl.u32 683565275, %v1069
        %v1071 = vshll.u32 683565275, %v1068
        %v1072 = vshrl.u32 2475754826, %v1069
        %v1073 = vor.u32 %v1071, %v1072
        %v1074 = vshll.u32 2475754826, %v1068
        %v1075 = vshrl.u32 2131351028, %v1069
        %v1076 = vor.u32 %v1074, %v1075
        %v1077 = vshll.u32 2131351028, %v1068
        %v1078 = vshrl.u32 2102212464, %v1069
        %v1079 = vor.u32 %v1077, %v1078
        %v1080 = vshll.u32 2102212464, %v1068
        %v1081 = vshrl.u32 920167782, %v1069
        %v1082 = vor.u32 %v1080, %v1081
        %v1083 = vshll.u32 920167782, %v1068
        %v1084 = vshrl.u32 1326507024, %v1069
        %v1085 = vor.u32 %v1083, %v1084
        %vm1086 = vcmp.lt.s32.totalorder %v1067, 1
        %vm1087 = vcmp.lt.s32.totalorder %v1067, 2
        %vm1088 = vcmp.lt.s32.totalorder %v1067, 3
        %vm1089 = vcmp.lt.s32.totalorder %v1067, 4
        %v1090 = vsel %vm1086, %v1070, %v1073
        %v1091 = vsel %vm1089, %v1079, 2102212464
        %v1092 = vsel %vm1088, %v1076, %v1091
        %v1093 = vsel %vm1087, %v1090, %v1092
        %v1094 = vsel %vm1086, %v1073, %v1076
        %v1095 = vsel %vm1089, %v1082, 920167782
        %v1096 = vsel %vm1088, %v1079, %v1095
        %v1097 = vsel %vm1087, %v1094, %v1096
        %v1098 = vsel %vm1086, %v1076, %v1079
        %v1099 = vsel %vm1089, %v1085, 1326507024
        %v1100 = vsel %vm1088, %v1082, %v1099
        %v1101 = vsel %vm1087, %v1098, %v1100
        %v1102 = vshll.u32 %v1062, 8
        %v1103 = vand.u32 %v1102, 65535
        %v1104 = vshrl.u32 %v1102, 16
        %v1105 = vand.u32 %v1101, 65535
        %v1106 = vshrl.u32 %v1101, 16
        %v1107 = vmul.u32 %v1103, %v1105
        %v1108 = vmul.u32 %v1103, %v1106
        %v1109 = vmul.u32 %v1104, %v1105
        %v1110 = vmul.u32 %v1104, %v1106
        %v1111 = vshll.u32 %v1108, 16
        %v1112 = vshrl.u32 %v1108, 16
        %v1113 = vshll.u32 %v1109, 16
        %v1114 = vshrl.u32 %v1109, 16
        %vm1115 = vc.u32 %v1107, %v1111
        %v1116 = vsel %vm1115, 1, 0
        %v1117 = vadd.s32 %v1107, %v1111
        %v1118 = vadd.s32 %v1110, %v1116
        %vm1119 = vc.u32 %v1117, %v1113
        %v1120 = vsel %vm1119, 1, 0
        %v1121 = vadd.s32 %v1117, %v1113
        %v1122 = vadd.s32 %v1118, %v1120
        %v1123 = vadd.s32 %v1122, %v1112
        %v1124 = vadd.s32 %v1123, %v1114
        %v1125 = vand.u32 %v1102, 65535
        %v1126 = vshrl.u32 %v1102, 16
        %v1127 = vand.u32 %v1097, 65535
        %v1128 = vshrl.u32 %v1097, 16
        %v1129 = vmul.u32 %v1125, %v1127
        %v1130 = vmul.u32 %v1125, %v1128
        %v1131 = vmul.u32 %v1126, %v1127
        %v1132 = vmul.u32 %v1126, %v1128
        %v1133 = vshll.u32 %v1130, 16
        %v1134 = vshrl.u32 %v1130, 16
        %v1135 = vshll.u32 %v1131, 16
        %v1136 = vshrl.u32 %v1131, 16
        %vm1137 = vc.u32 %v1129, %v1133
        %v1138 = vsel %vm1137, 1, 0
        %v1139 = vadd.s32 %v1129, %v1133
        %v1140 = vadd.s32 %v1132, %v1138
        %vm1141 = vc.u32 %v1139, %v1135
        %v1142 = vsel %vm1141, 1, 0
        %v1143 = vadd.s32 %v1139, %v1135
        %v1144 = vadd.s32 %v1140, %v1142
        %v1145 = vadd.s32 %v1144, %v1134
        %v1146 = vadd.s32 %v1145, %v1136
        %v1147 = vmul.u32 %v1102, %v1093
        %v1148 = vadd.s32 %v1124, %v1143
        %vm1149 = vc.u32 %v1124, %v1143
        %v1150 = vadd.s32 %v1146, 1
        %v1151 = vsel %vm1149, %v1150, %v1146
        %v1152 = vadd.s32 %v1147, %v1151
        %v1153 = vadd.s32 %v1152, 536870912
        %v1154 = vshrl.u32 %v1153, 30
        %v1155 = vshll.u32 %v1154, 30
        %v1156 = vsub.s32 %v1152, %v1155
        %vm1157 = vcmp.lt.s32.totalorder %v1156, 0
        %v1158 = vsub.s32 0, %v1156
        %v1159 = vsel %vm1157, %v1158, %v1156
        %v1160 = vclz %v1159
        %v1161 = vsub.s32 %v1160, 2
        %vm1162 = vcmp.gt.s32.totalorder 0, %v1161
        %v1163 = vsel %vm1162, 0, %v1161
        %v1164 = vsub.s32 32, %v1163
        %v1165 = vshll.u32 %v1156, %v1163
        %v1166 = vshrl.u32 %v1148, %v1164
        %v1167 = vor.u32 %v1165, %v1166
        %v1168 = vsub.s32 4294967266, %v1163
        %v1169 = vadd.s32 %v1168, 127
        %v1170 = vshll.u32 %v1169, 23
        %v1171 = vor.u32 4788187, %v1170
        %v1172 = vand.u32 2147483647, %v1171
        %v1174 = vcvt.s32.f32 %v1167
        %v1175 = vmul.f32 %v1174, %v1172
        %v1176 = vxor.u32 %v1175, 2147483648
        %v1177 = vsel %vm1056, %v1176, %v1175
        %v1178 = vsub.s32 4, %v1154
        %v1179 = vsel %vm1056, %v1178, %v1154
        %v1180 = vsel %vm1055, %v1053, %v1177
        %v1181 = vsel %vm1055, 0, %v1179
        %v1182 = vmul.f32 %v1180, %v1180
        %v1183 = vmul.f32 %v1182, -0.001358992
        %v1184 = vadd.f32 %v1183, 0.041655596
        %v1185 = vmul.f32 %v1182, %v1184
        %v1186 = vadd.f32 %v1185, -0.4999988
        %v1187 = vmul.f32 %v1182, %v1186
        %v1188 = vadd.f32 1.0, %v1187
        %v1189 = vmul.f32 %v1180, %v1180
        %v1190 = vmul.f32 %v1189, -0.00019511016
        %v1191 = vadd.f32 %v1190, 0.008332121
        %v1192 = vmul.f32 %v1189, %v1191
        %v1193 = vadd.f32 %v1192, -0.16666654
        %v1194 = vmul.f32 %v1189, %v1193
        %v1195 = vadd.f32 %v1194, 1.0
        %v1196 = vmul.f32 %v1195, %v1180
        %vm1197 = vweird.f32 %v1053
        %v1198 = vand.u32 %v1181, 3
        %vm1199 = vcmp.lt.s32.totalorder %v1198, 2
        %vm1200 = vcmp.eq.s32.totalorder %v1198, 0
        %v1201 = vxor.u32 %v1196, 2147483648
        %v1202 = vsel %vm1200, %v1188, %v1201
        %vm1203 = vcmp.eq.s32.totalorder %v1198, 2
        %v1204 = vxor.u32 %v1188, 2147483648
        %v1205 = vsel %vm1203, %v1204, %v1196
        %v1206 = vsel %vm1199, %v1202, %v1205
        %v1207 = vsel %vm1197, nan, %v1206
        %v1208 = vsub.f32 %v1052, 0.7853982
        %v1209 = vand.u32 2147483647, %v1208
        %vm1210 = vcmp.le.f32.partialorder %v1209, 0.7853982
        %vm1211 = vcmp.lt.s32.totalorder %v1208, 0
        %v1212 = vand.u32 %v1208, 2139095040
        %v1213 = vshrl.u32 %v1212, 23
        %v1214 = vsub.s32 %v1213, 127
        %v1215 = vand.u32 2147483647, %v1208
        %v1216 = vand.u32 %v1215, 8388607
        %v1217 = vor.u32 %v1216, 8388608
        %v1218 = vsub.s32 0, %v1217
        %v1219 = vadd.s32 %v1214, 1
        %vm1220 = vcmp.gt.s32.totalorder %v1219, 0
        %v1221 = vsel %vm1220, %v1219, 0
        %v1222 = vshrl.u32 %v1221, 5
        %v1223 = vand.u32 %v1221, 31
        %v1224 = vsub.s32 32, %v1223
        %v1225 = vshrl.u32 683565275, %v1224
        %v1226 = vshll.u32 683565275, %v1223
        %v1227 = vshrl.u32 2475754826, %v1224
        %v1228 = vor.u32 %v1226, %v1227
        %v1229 = vshll.u32 2475754826, %v1223
        %v1230 = vshrl.u32 2131351028, %v1224
        %v1231 = vor.u32 %v1229, %v1230
        %v1232 = vshll.u32 2131351028, %v1223
        %v1233 = vshrl.u32 2102212464, %v1224
        %v1234 = vor.u32 %v1232, %v1233
        %v1235 = vshll.u32 2102212464, %v1223
        %v1236 = vshrl.u32 920167782, %v1224
        %v1237 = vor.u32 %v1235, %v1236
        %v1238 = vshll.u32 920167782, %v1223
        %v1239 = vshrl.u32 1326507024, %v1224
        %v1240 = vor.u32 %v1238, %v1239
        %vm1241 = vcmp.lt.s32.totalorder %v1222, 1
        %vm1242 = vcmp.lt.s32.totalorder %v1222, 2
        %vm1243 = vcmp.lt.s32.totalorder %v1222, 3
        %vm1244 = vcmp.lt.s32.totalorder %v1222, 4
        %v1245 = vsel %vm1241, %v1225, %v1228
        %v1246 = vsel %vm1244, %v1234, 2102212464
        %v1247 = vsel %vm1243, %v1231, %v1246
        %v1248 = vsel %vm1242, %v1245, %v1247
        %v1249 = vsel %vm1241, %v1228, %v1231
        %v1250 = vsel %vm1244, %v1237, 920167782
        %v1251 = vsel %vm1243, %v1234, %v1250
        %v1252 = vsel %vm1242, %v1249, %v1251
        %v1253 = vsel %vm1241, %v1231, %v1234
        %v1254 = vsel %vm1244, %v1240, 1326507024
        %v1255 = vsel %vm1243, %v1237, %v1254
        %v1256 = vsel %vm1242, %v1253, %v1255
        %v1257 = vshll.u32 %v1217, 8
        %v1258 = vand.u32 %v1257, 65535
        %v1259 = vshrl.u32 %v1257, 16
        %v1260 = vand.u32 %v1256, 65535
        %v1261 = vshrl.u32 %v1256, 16
        %v1262 = vmul.u32 %v1258, %v1260
        %v1263 = vmul.u32 %v1258, %v1261
        %v1264 = vmul.u32 %v1259, %v1260
        %v1265 = vmul.u32 %v1259, %v1261
        %v1266 = vshll.u32 %v1263, 16
        %v1267 = vshrl.u32 %v1263, 16
        %v1268 = vshll.u32 %v1264, 16
        %v1269 = vshrl.u32 %v1264, 16
        %vm1270 = vc.u32 %v1262, %v1266
        %v1271 = vsel %vm1270, 1, 0
        %v1272 = vadd.s32 %v1262, %v1266
        %v1273 = vadd.s32 %v1265, %v1271
        %vm1274 = vc.u32 %v1272, %v1268
        %v1275 = vsel %vm1274, 1, 0
        %v1276 = vadd.s32 %v1272, %v1268
        %v1277 = vadd.s32 %v1273, %v1275
        %v1278 = vadd.s32 %v1277, %v1267
        %v1279 = vadd.s32 %v1278, %v1269
        %v1280 = vand.u32 %v1257, 65535
        %v1281 = vshrl.u32 %v1257, 16
        %v1282 = vand.u32 %v1252, 65535
        %v1283 = vshrl.u32 %v1252, 16
        %v1284 = vmul.u32 %v1280, %v1282
        %v1285 = vmul.u32 %v1280, %v1283
        %v1286 = vmul.u32 %v1281, %v1282
        %v1287 = vmul.u32 %v1281, %v1283
        %v1288 = vshll.u32 %v1285, 16
        %v1289 = vshrl.u32 %v1285, 16
        %v1290 = vshll.u32 %v1286, 16
        %v1291 = vshrl.u32 %v1286, 16
        %vm1292 = vc.u32 %v1284, %v1288
        %v1293 = vsel %vm1292, 1, 0
        %v1294 = vadd.s32 %v1284, %v1288
        %v1295 = vadd.s32 %v1287, %v1293
        %vm1296 = vc.u32 %v1294, %v1290
        %v1297 = vsel %vm1296, 1, 0
        %v1298 = vadd.s32 %v1294, %v1290
        %v1299 = vadd.s32 %v1295, %v1297
        %v1300 = vadd.s32 %v1299, %v1289
        %v1301 = vadd.s32 %v1300, %v1291
        %v1302 = vmul.u32 %v1257, %v1248
        %v1303 = vadd.s32 %v1279, %v1298
        %vm1304 = vc.u32 %v1279, %v1298
        %v1305 = vadd.s32 %v1301, 1
        %v1306 = vsel %vm1304, %v1305, %v1301
        %v1307 = vadd.s32 %v1302, %v1306
        %v1308 = vadd.s32 %v1307, 536870912
        %v1309 = vshrl.u32 %v1308, 30
        %v1310 = vshll.u32 %v1309, 30
        %v1311 = vsub.s32 %v1307, %v1310
        %vm1312 = vcmp.lt.s32.totalorder %v1311, 0
        %v1313 = vsub.s32 0, %v1311
        %v1314 = vsel %vm1312, %v1313, %v1311
        %v1315 = vclz %v1314
        %v1316 = vsub.s32 %v1315, 2
        %vm1317 = vcmp.gt.s32.totalorder 0, %v1316
        %v1318 = vsel %vm1317, 0, %v1316
        %v1319 = vsub.s32 32, %v1318
        %v1320 = vshll.u32 %v1311, %v1318
        %v1321 = vshrl.u32 %v1303, %v1319
        %v1322 = vor.u32 %v1320, %v1321
        %v1323 = vsub.s32 4294967266, %v1318
        %v1324 = vadd.s32 %v1323, 127
        %v1325 = vshll.u32 %v1324, 23
        %v1326 = vor.u32 4788187, %v1325
        %v1327 = vand.u32 2147483647, %v1326
        %v1329 = vcvt.s32.f32 %v1322
        %v1330 = vmul.f32 %v1329, %v1327
        %v1331 = vxor.u32 %v1330, 2147483648
        %v1332 = vsel %vm1211, %v1331, %v1330
        %v1333 = vsub.s32 4, %v1309
        %v1334 = vsel %vm1211, %v1333, %v1309
        %v1335 = vsel %vm1210, %v1208, %v1332
        %v1336 = vsel %vm1210, 0, %v1334
        %v1337 = vmul.f32 %v1335, %v1335
        %v1338 = vmul.f32 %v1337, -0.001358992
        %v1339 = vadd.f32 %v1338, 0.041655596
        %v1340 = vmul.f32 %v1337, %v1339
        %v1341 = vadd.f32 %v1340, -0.4999988
        %v1342 = vmul.f32 %v1337, %v1341
        %v1343 = vadd.f32 1.0, %v1342
        %v1344 = vmul.f32 %v1335, %v1335
        %v1345 = vmul.f32 %v1344, -0.00019511016
        %v1346 = vadd.f32 %v1345, 0.008332121
        %v1347 = vmul.f32 %v1344, %v1346
        %v1348 = vadd.f32 %v1347, -0.16666654
        %v1349 = vmul.f32 %v1344, %v1348
        %v1350 = vadd.f32 %v1349, 1.0
        %v1351 = vmul.f32 %v1350, %v1335
        %vm1352 = vweird.f32 %v1208
        %v1353 = vand.u32 %v1336, 3
        %vm1354 = vcmp.lt.s32.totalorder %v1353, 2
        %vm1355 = vcmp.eq.s32.totalorder %v1353, 0
        %v1356 = vxor.u32 %v1351, 2147483648
        %v1357 = vsel %vm1355, %v1343, %v1356
        %vm1358 = vcmp.eq.s32.totalorder %v1353, 2
        %v1359 = vxor.u32 %v1343, 2147483648
        %v1360 = vsel %vm1358, %v1359, %v1351
        %v1361 = vsel %vm1354, %v1357, %v1360
        %v1362 = vsel %vm1352, nan, %v1361
        %v1363 = vld [vmem:[%s4] sm:$0xff]
        %v1364 = vld [vmem:[%s4 + $0x8] sm:$0xff]
        %v1365 = vld [vmem:[%s4 + $0x10] sm:$0xff]
        %v1366 = vld [vmem:[%s4 + $0x18] sm:$0xff]
        %v1367 = vld [vmem:[%s4 + $0x20] sm:$0xff]
        %v1368 = vld [vmem:[%s4 + $0x28] sm:$0xff]
        %v1369 = vld [vmem:[%s4 + $0x30] sm:$0xff]
        %v1370 = vld [vmem:[%s4 + $0x38] sm:$0xff]
        %vm1371 = vcmask 130048
        %v1373 = vsel %vm1371, %v1363, 0
        %v1376 = vsel %vm1371, %v1364, 0
        %v1379 = vsel %vm1371, %v1365, 0
        %v1382 = vsel %vm1371, %v1366, 0
        %v1385 = vsel %vm1371, %v1367, 0
        %v1388 = vsel %vm1371, %v1368, 0
        %v1391 = vsel %vm1371, %v1369, 0
        %v1394 = vsel %vm1371, %v1370, 0
        %1396 = vmatpush.msra.mxu0 0.0
        %1397 = vmatpush.msra.mxu0 0.0
        %1398 = vmatpush.msra.mxu0 0.0
        %1399 = vmatpush.msra.mxu0 0.0
        %1400 = vmatpush.msra.mxu0 0.0
        %1401 = vmatpush.msra.mxu0 0.0
        %1402 = vmatpush.msra.mxu0 0.0
        %1403 = vmatpush.msra.mxu0 0.0
        %1404 = vmatpush.msra.mxu0 0.0
        %1405 = vmatpush.msra.mxu0 0.0
        %1406 = vmatpush.msra.mxu0 0.0
        %1407 = vmatpush.msra.mxu0 0.0
        %1408 = vmatpush.msra.mxu0 0.0
        %1409 = vmatpush.msra.mxu0 0.0
        %1410 = vmatpush.msra.mxu0 %v1362
        %1411 = vmatpush.msra.mxu0 %v1207
        %1412 = vmatmul.f32.gmra.mxu0 %v1373
        %v1413 = vpop.f32.mrf.mxu0
        %v1414 = vadd.f32 0.0, %v1413
        %1415 = vmatmul.f32.gmra.mxu0 %v1376
        %v1416 = vpop.f32.mrf.mxu0
        %v1417 = vadd.f32 0.0, %v1416
        %1418 = vmatmul.f32.gmra.mxu0 %v1379
        %v1419 = vpop.f32.mrf.mxu0
        %v1420 = vadd.f32 0.0, %v1419
        %1421 = vmatmul.f32.gmra.mxu0 %v1382
        %v1422 = vpop.f32.mrf.mxu0
        %v1423 = vadd.f32 0.0, %v1422
        %1424 = vmatmul.f32.gmra.mxu0 %v1385
        %v1425 = vpop.f32.mrf.mxu0
        %v1426 = vadd.f32 0.0, %v1425
        %1427 = vmatmul.f32.gmra.mxu0 %v1388
        %v1428 = vpop.f32.mrf.mxu0
        %v1429 = vadd.f32 0.0, %v1428
        %1430 = vmatmul.f32.gmra.mxu0 %v1391
        %v1431 = vpop.f32.mrf.mxu0
        %v1432 = vadd.f32 0.0, %v1431
        %1433 = vmatmul.f32.gmra.mxu0 %v1394
        %v1434 = vpop.f32.mrf.mxu0
        %v1435 = vadd.f32 0.0, %v1434
        %1436 = vdwg.mxu0
        %v1437 = vmul.f32 %v1414, %v1420
        %v1438 = vmul.f32 %v1417, %v1423
        %v1439 = vmul.f32 %v1437, %v1426
        %v1440 = vmul.f32 %v1438, %v1429
        %v1441 = vmul.f32 %v1439, %v1432
        %v1442 = vmul.f32 %v1440, %v1435
        %v1443 = vld [vmem:[%s5] sm:$0xff]
        %v1444 = vld [vmem:[%s5 + $0x8] sm:$0xff]
        %v1446 = vsel %vm1371, %v1443, 0
        %v1449 = vsel %vm1371, %v1444, 0
        %1451 = vmatpush.msra.mxu0 0.0
        %1452 = vmatpush.msra.mxu0 0.0
        %1453 = vmatpush.msra.mxu0 0.0
        %1454 = vmatpush.msra.mxu0 0.0
        %1455 = vmatpush.msra.mxu0 0.0
        %1456 = vmatpush.msra.mxu0 0.0
        %1457 = vmatpush.msra.mxu0 0.0
        %1458 = vmatpush.msra.mxu0 0.0
        %1459 = vmatpush.msra.mxu0 0.0
        %1460 = vmatpush.msra.mxu0 0.0
        %1461 = vmatpush.msra.mxu0 0.0
        %1462 = vmatpush.msra.mxu0 0.0
        %1463 = vmatpush.msra.mxu0 0.0
        %1464 = vmatpush.msra.mxu0 0.0
        %1465 = vmatpush.msra.mxu0 %v1442
        %1466 = vmatpush.msra.mxu0 %v1441
        %1467 = vmatmul.f32.gmra.mxu0 %v1446
        %v1468 = vpop.f32.mrf.mxu0
        %v1469 = vadd.f32 0.0, %v1468
        %1470 = vmatmul.f32.gmra.mxu0 %v1449
        %v1471 = vpop.f32.mrf.mxu0
        %v1472 = vadd.f32 0.0, %v1471
        %1473 = vdwg.mxu0
        %v1474 = vmul.f32 %v1469, %v1469
        %v1475 = vmul.f32 %v1472, %v1472
        %v1476 = vld [vmem:[%s6] sm:$0xff]
        %v1477 = vld [vmem:[%s6 + $0x8] sm:$0x3]
        %v1478 = vld [vmem:[%s7] sm:$0xff]
        %v1479 = vld [vmem:[%s7 + $0x8] sm:$0x3]
        %1481 = vset.pattern.permute.xlu0 0
        %1482 = vperm.xlu0 %1481, %v1478
        %v1483 = vpop.permute.xlu0 %1482
        %1486 = vset.pattern.permute.xlu0 0
        %1487 = vperm.xlu0 %1486, %v1479
        %v1488 = vpop.permute.xlu0 %1487
        %v1491 = vsel %vm1371, %v1476, 0
        %v1494 = vsel %vm1371, %v1477, 0
        %1496 = vmatpush.msra.mxu0 0.0
        %1497 = vmatpush.msra.mxu0 0.0
        %1498 = vmatpush.msra.mxu0 0.0
        %1499 = vmatpush.msra.mxu0 0.0
        %1500 = vmatpush.msra.mxu0 0.0
        %1501 = vmatpush.msra.mxu0 0.0
        %1502 = vmatpush.msra.mxu0 0.0
        %1503 = vmatpush.msra.mxu0 0.0
        %1504 = vmatpush.msra.mxu0 0.0
        %1505 = vmatpush.msra.mxu0 0.0
        %1506 = vmatpush.msra.mxu0 0.0
        %1507 = vmatpush.msra.mxu0 0.0
        %1508 = vmatpush.msra.mxu0 0.0
        %1509 = vmatpush.msra.mxu0 0.0
        %1510 = vmatpush.msra.mxu0 %v1475
        %1511 = vmatpush.msra.mxu0 %v1474
        %1512 = vmatmul.f32.gmra.mxu0 %v1491
        %v1513 = vpop.f32.mrf.mxu0
        %v1514 = vadd.f32 %v1483, %v1513
        %1515 = vmatmul.f32.gmra.mxu0 %v1494
        %v1516 = vpop.f32.mrf.mxu0
        %v1517 = vadd.f32 %v1488, %v1516
        %1518 = vdwg.mxu0
        %1519 = vst [vmem:[%s326] sm:$0xff] %v1514
        %1520 = vst [vmem:[%s326 + $0x8] sm:$0x3] %v1517
        %s1521 = sand.u32 %s206, 1
        %s1522 = scalar_lea.sflag [#allocation4], %s1521
        %s1523 = sand.u32 %s206, 1
        %s1524 = smul.addr %s1523, 16
        %s1525 = scalar_lea.vmem [#allocation5], %s1524
        // Predicated region
        $region57: #{tpu_custom_call.1} parent=51 // pred_check
          %p1526 = pneg %p216
        $region58: #{tpu_custom_call.1} parent=51 // pred_check_branch
          %1528 = sbr.rel (%p1526) target = $region60
        $region59: #{tpu_custom_call.1} parent=51 // pred_region
          %1530 = vsyncadd %s1522, 0
          %s1531 = smul.addr %s25, 8
          %s1532 = scalar_lea.hbm %s8, %s1531
          %s1533 = sshll.u32 %s1525, 4
          %s1534 = int_to_ptr.vmem [resolvable:$true] %s1533
          %s1535 = sshll.u32 %s1532, 4
          %s1536 = int_to_ptr.hbm [resolvable:$true] %s1535
          %1541 = dma.vmem_to_hbm [thread:$0]  %s1534, 256, %s1536, %s1522, 128, 256, 8
        $region60: #{tpu_custom_call.1} parent=51 // pred_fallthru
          _
      $region52: #{tpu_custom_call.1} parent=5 // pred_fallthru
        _
      %p1542 = scmp.le.s32.totalorder 2, %s20
      // Predicated region
      $region61: #{tpu_custom_call.1} parent=5 // pred_check
        %p1543 = pneg %p1542
      $region62: #{tpu_custom_call.1} parent=5 // pred_check_branch
        %1545 = sbr.rel (%p1543) target = $region64
      $region63: #{tpu_custom_call.1} parent=5 // pred_region
        %s1546 = ssub.s32 %s20, 2
        // Predicated region
        $region65: #{tpu_custom_call.1} parent=63 // pred_check
          %p1547 = pneg %p222
        $region66: #{tpu_custom_call.1} parent=63 // pred_check_branch
          %1549 = sbr.rel (%p1547) target = $region68
        $region67: #{tpu_custom_call.1} parent=63 // pred_region
          %s1550 = sand.u32 %s207, 1
          %s1551 = scalar_lea.sflag [#allocation4], %s1550
          %s1552 = sand.u32 %s207, 1
          %s1553 = smul.addr %s1552, 16
          %s1554 = scalar_lea.vmem [#allocation5], %s1553
          %1556 = dma.done %s1551, 256
        $region68: #{tpu_custom_call.1} parent=63 // pred_fallthru
          _
      $region64: #{tpu_custom_call.1} parent=5 // pred_fallthru
        _
    $region6: #{tpu_custom_call.1} parent=1 // loop_footer
      %s24 = sadd.s32 1, %s20
    $region7: #{tpu_custom_call.1} parent=1 // loop_footer_branch
      %19 = sbr.rel target = $region3
    $region8: #{tpu_custom_call.1} parent=1 // loop_exit
      _
    %1557 = vsyncpa [#allocation3], 1
    %s1558 = scalar_lea.sflag [#allocation3], 1
    %1559 = vsyncpa %s1558, 1
    %1560 = vsyncpa [#allocation4], 1
    %s1561 = scalar_lea.sflag [#allocation4], 1
    %1562 = vsyncpa %s1561, 1

</llo_original>
